<compile_context>
chip_gen: v7x
topology: tpu7x:2x2x1
jax: 0.10.0
libtpu: 0.0.40
codegen_flags: <defaults>
</compile_context>

<pallas_src>
import jax
import jax.numpy as jnp
from jax import lax
from jax.experimental import pallas as pl
from jax.experimental.pallas import tpu as pltpu

IN_DIM = 512
HID_DIM = 64
NUM_CLASSES = 1
TM = 512  # frames per grid step (sublane-aligned, 512x512 bf16 tile = 512 KiB)


def classifier_kernel(f_ref, w1_ref, b1_ref, w2_ref, b2_ref, o_ref):
    # f_ref:  (TM, 512)  bf16   features tile
    # w1_ref: (512, 64)  bf16   Linear(512,64) weight, stored [in, out]
    # b1_ref: (1, 64)    f32
    # w2_ref: (1, 64)    f32    Linear(64,1) weight, stored as a row (w2.T)
    # b2_ref: (1, 1)     f32
    # o_ref:  (1, 1, TM) f32    lane-dense sigmoid outputs for this tile
    h = jnp.dot(f_ref[...], w1_ref[...], preferred_element_type=jnp.float32)
    h = jnp.maximum(h + b1_ref[...], 0.0)  # ReLU, (TM, 64) f32
    # Dropout(0.1) -> identity in eval/inference mode.
    # Contract the hidden axis of h against the (1, 64) weight row so the
    # result is lane-dense (1, TM) instead of a 1-lane (TM, 1) column.
    logits = lax.dot_general(
        w2_ref[...], h,
        dimension_numbers=(((1,), (1,)), ((), ())),
        preferred_element_type=jnp.float32)            # (1, TM)
    logits = logits + b2_ref[...]                      # broadcast (1, 1)
    sig = pl.reciprocal(1.0 + jnp.exp(-logits), approx=True)  # sigmoid on EUP
    o_ref[0] = sig.astype(o_ref.dtype)


def pitch_classifier_forward(features, w1, b1, w2, b2, *, tm=TM):
    """features: [N, 512].  w1: [512,64], b1: [.,64], w2: [64,1], b2: [.,1].

    Returns [N, 1] float32 sigmoid probabilities (PyTorch eval semantics).
    """
    n, d = features.shape
    assert d == IN_DIM
    assert w1.shape == (IN_DIM, HID_DIM)
    assert w2.shape == (HID_DIM, NUM_CLASSES) and NUM_CLASSES == 1

    num_tiles = pl.cdiv(n, tm)
    n_pad = num_tiles * tm
    if n_pad != n:
        features = jnp.pad(features, ((0, n_pad - n), (0, 0)))

    # bf16 features/W1: MXU-native and halves the dominant HBM stream.
    f_bf16 = features.astype(jnp.bfloat16)
    w1_bf16 = w1.astype(jnp.bfloat16)
    w2_row = w2.astype(jnp.float32).T.reshape(1, HID_DIM)
    b1_row = b1.astype(jnp.float32).reshape(1, HID_DIM)
    b2_scl = b2.astype(jnp.float32).reshape(1, 1)

    out = pl.pallas_call(
        classifier_kernel,
        out_shape=jax.ShapeDtypeStruct((num_tiles, 1, tm), jnp.float32),
        grid_spec=pltpu.PrefetchScalarGridSpec(
            num_scalar_prefetch=0,
            grid=(num_tiles,),
            in_specs=[
                pl.BlockSpec((tm, IN_DIM), lambda i: (i, 0)),           # features tile
                pl.BlockSpec((IN_DIM, HID_DIM), lambda i: (0, 0)),      # W1 (resident)
                pl.BlockSpec((1, HID_DIM), lambda i: (0, 0)),           # b1
                pl.BlockSpec((1, HID_DIM), lambda i: (0, 0)),           # W2 row
                pl.BlockSpec((1, 1), lambda i: (0, 0)),                 # b2
            ],
            out_specs=pl.BlockSpec((1, 1, tm), lambda i: (i, 0, 0)),    # lane-dense row
        ),
        compiler_params=pltpu.CompilerParams(
            dimension_semantics=("parallel",)),
    )(f_bf16, w1_bf16, b1_row, w2_row, b2_scl)

    # (num_tiles, 1, TM) lane-dense slab -> frame order -> (N, 1)
    return out.reshape(n_pad)[:n].reshape(n, NUM_CLASSES)


def init_params(key):
    """Deterministic init matching nn.Linear default (U[-1/sqrt(fan_in), +1/sqrt(fan_in)])."""
    k1, k2, k3, k4 = jax.random.split(key, 4)
    bound1 = 1.0 / jnp.sqrt(IN_DIM)
    bound2 = 1.0 / jnp.sqrt(HID_DIM)
    w1 = jax.random.uniform(k1, (IN_DIM, HID_DIM), jnp.float32, -bound1, bound1)
    b1 = jax.random.uniform(k2, (1, HID_DIM), jnp.float32, -bound1, bound1)
    w2 = jax.random.uniform(k3, (HID_DIM, NUM_CLASSES), jnp.float32, -bound2, bound2)
    b2 = jax.random.uniform(k4, (1, NUM_CLASSES), jnp.float32, -bound2, bound2)
    return w1, b1, w2, b2


def reference_forward(features, w1, b1, w2, b2):
    # Mirrors the kernel's bf16 first-layer inputs with f32 accumulation.
    f = features.astype(jnp.bfloat16).astype(jnp.float32)
    w1f = w1.astype(jnp.bfloat16).astype(jnp.float32)
    h = jnp.maximum(f @ w1f + b1.reshape(1, -1), 0.0)
    return jax.nn.sigmoid(h @ w2 + b2.reshape(1, -1))


if __name__ == "__main__":
    key = jax.random.PRNGKey(0)
    kf, kp = jax.random.split(key)

    # Synthetic stand-in for CREPE's [N, 512] embedding output.
    # Ragged N (not a multiple of TM) exercises the padding path and a 2-step grid.
    N_FRAMES = 600
    features = jax.random.normal(kf, (N_FRAMES, IN_DIM), jnp.float32)

    w1, b1, w2, b2 = init_params(kp)

    out = pitch_classifier_forward(features, w1, b1, w2, b2)
    out = jax.block_until_ready(out)

    ref = reference_forward(features, w1, b1, w2, b2)
    assert out.shape == (N_FRAMES, NUM_CLASSES)
    max_err = float(jnp.max(jnp.abs(out - ref)))
    assert jnp.allclose(out, ref, atol=5e-3, rtol=0.0), max_err

    print("KERNEL_OK")
</pallas_src>

<mosaic_0001>
module attributes {stable_mosaic.version = 11 : i64} {
  func.func @classifier_kernel(%arg0: i32, %arg1: memref<512x512xbf16, #tpu.memory_space<vmem>>, %arg2: memref<512x64xbf16, #tpu.memory_space<vmem>>, %arg3: memref<1x64xf32, #tpu.memory_space<vmem>>, %arg4: memref<1x64xf32, #tpu.memory_space<vmem>>, %arg5: memref<1x1xf32, #tpu.memory_space<vmem>>, %arg6: memref<1x1x512xf32, #tpu.memory_space<vmem>>) attributes {dimension_semantics = [#tpu.dimension_semantics<parallel>], iteration_bounds = array<i64: 2>, scalar_prefetch = 0 : i64, scratch_operands = 0 : i64, tpu.core_type = #tpu.core_type<tc>, window_params = [{transform_indices = @transform_0, window_bounds = array<i64: 512, 512>}, {pipeline_mode = #tpu.pipeline_mode<synchronous>, transform_indices = @transform_1, window_bounds = array<i64: 512, 64>}, {pipeline_mode = #tpu.pipeline_mode<synchronous>, transform_indices = @transform_2, window_bounds = array<i64: 1, 64>}, {pipeline_mode = #tpu.pipeline_mode<synchronous>, transform_indices = @transform_3, window_bounds = array<i64: 1, 64>}, {pipeline_mode = #tpu.pipeline_mode<synchronous>, transform_indices = @transform_4, window_bounds = array<i64: 1, 1>}, {transform_indices = @transform_5, window_bounds = array<i64: 1, 1, 512>}]} {
    %c0 = arith.constant 0 : index
    %c0_0 = arith.constant 0 : index
    %0 = vector.load %arg1[%c0, %c0_0] : memref<512x512xbf16, #tpu.memory_space<vmem>>, vector<512x512xbf16>
    %c0_1 = arith.constant 0 : index
    %c0_2 = arith.constant 0 : index
    %1 = vector.load %arg2[%c0_1, %c0_2] : memref<512x64xbf16, #tpu.memory_space<vmem>>, vector<512x64xbf16>
    %cst = arith.constant dense<0.000000e+00> : vector<512x64xf32>
    %2 = tpu.matmul %0, %1, %cst {dimension_numbers = #tpu.dot_dimension_numbers<[1], [0], [0], [1], [0, 0, 1, 1], [], []>} : vector<512x512xbf16>, vector<512x64xbf16>, vector<512x64xf32> -> vector<512x64xf32>
    %c0_3 = arith.constant 0 : index
    %c0_4 = arith.constant 0 : index
    %3 = vector.load %arg3[%c0_3, %c0_4] : memref<1x64xf32, #tpu.memory_space<vmem>>, vector<1x64xf32>
    %4 = vector.broadcast %3 : vector<1x64xf32> to vector<512x64xf32>
    %5 = arith.addf %2, %4 : vector<512x64xf32>
    %cst_5 = arith.constant 0.000000e+00 : f32
    %6 = vector.broadcast %cst_5 : f32 to vector<512x64xf32>
    %7 = arith.maximumf %5, %6 : vector<512x64xf32>
    %c0_6 = arith.constant 0 : index
    %c0_7 = arith.constant 0 : index
    %8 = vector.load %arg4[%c0_6, %c0_7] : memref<1x64xf32, #tpu.memory_space<vmem>>, vector<1x64xf32>
    %cst_8 = arith.constant dense<0.000000e+00> : vector<1x512xf32>
    %9 = tpu.matmul %8, %7, %cst_8 {dimension_numbers = #tpu.dot_dimension_numbers<[1], [1], [0], [0], [0, 0, 1, 0], [], []>} : vector<1x64xf32>, vector<512x64xf32>, vector<1x512xf32> -> vector<1x512xf32>
    %c0_9 = arith.constant 0 : index
    %c0_10 = arith.constant 0 : index
    %10 = vector.load %arg5[%c0_9, %c0_10] : memref<1x1xf32, #tpu.memory_space<vmem>>, vector<1x1xf32>
    %11 = vector.broadcast %10 : vector<1x1xf32> to vector<1x512xf32>
    %12 = arith.addf %9, %11 : vector<1x512xf32>
    %cst_11 = arith.constant 0.000000e+00 : f32
    %13 = vector.broadcast %cst_11 : f32 to vector<1x512xf32>
    %14 = arith.subf %13, %12 : vector<1x512xf32>
    %15 = math.exp %14 : vector<1x512xf32>
    %cst_12 = arith.constant 1.000000e+00 : f32
    %16 = vector.broadcast %cst_12 : f32 to vector<1x512xf32>
    %17 = arith.addf %16, %15 : vector<1x512xf32>
    %18 = tpu.reciprocal %17 {approx = true} : vector<1x512xf32> -> vector<1x512xf32>
    %c0_13 = arith.constant 0 : index
    %c0_14 = arith.constant 0 : index
    %c0_15 = arith.constant 0 : index
    %19 = vector.load %arg6[%c0_13, %c0_14, %c0_15] : memref<1x1x512xf32, #tpu.memory_space<vmem>>, vector<1x1x512xf32>
    %20 = vector.shape_cast %19 : vector<1x1x512xf32> to vector<1x512xf32>
    %21 = vector.shape_cast %18 : vector<1x512xf32> to vector<1x1x512xf32>
    tpu.vector_store %arg6[%c0_13, %c0_14, %c0_15], %21 {strides = array<i32>} : memref<1x1x512xf32, #tpu.memory_space<vmem>>, vector<1x1x512xf32>,
    return
  }
  func.func @transform_0(%arg0: i32) -> (i32, i32) {
    %c0_i32 = arith.constant 0 : i32
    %c0_i32_0 = arith.constant 0 : i32
    return %arg0, %c0_i32 : i32, i32
  }
  func.func @transform_1(%arg0: i32) -> (i32, i32) {
    %c0_i32 = arith.constant 0 : i32
    %c0_i32_0 = arith.constant 0 : i32
    %c0_i32_1 = arith.constant 0 : i32
    return %c0_i32, %c0_i32_0 : i32, i32
  }
  func.func @transform_2(%arg0: i32) -> (i32, i32) {
    %c0_i32 = arith.constant 0 : i32
    %c0_i32_0 = arith.constant 0 : i32
    %c0_i32_1 = arith.constant 0 : i32
    return %c0_i32, %c0_i32_0 : i32, i32
  }
  func.func @transform_3(%arg0: i32) -> (i32, i32) {
    %c0_i32 = arith.constant 0 : i32
    %c0_i32_0 = arith.constant 0 : i32
    %c0_i32_1 = arith.constant 0 : i32
    return %c0_i32, %c0_i32_0 : i32, i32
  }
  func.func @transform_4(%arg0: i32) -> (i32, i32) {
    %c0_i32 = arith.constant 0 : i32
    %c0_i32_0 = arith.constant 0 : i32
    %c0_i32_1 = arith.constant 0 : i32
    return %c0_i32, %c0_i32_0 : i32, i32
  }
  func.func @transform_5(%arg0: i32) -> (i32, i32, i32) {
    %c0_i32 = arith.constant 0 : i32
    %c0_i32_0 = arith.constant 0 : i32
    %c0_i32_1 = arith.constant 0 : i32
    return %arg0, %c0_i32, %c0_i32_0 : i32, i32, i32
  }
}

</mosaic_0001>

<llo_original>
// kernel: tpu_custom_call.1
$region0: #{tpu_custom_call.1}
  #allocation0 [shape = 'u32[]', space=smem, size = 0x4, offset = 0x4, fixed_abs, tag = 'smem constant byte address 0x4 - core index']
  #allocation1 [shape = 'u32[144,128]{1,0:T(1,128)}', space=vmem, size = 0x12000, scoped, tag = 'internal scratch']
  #allocation2 [shape = 'f32[1,1]{1,0:T(1,128)S(1)}', space=vmem, size = 0x200, scoped, tag = 'scoped memory for tpu_custom_call.1']
  %s0 = inlined_call_operand.hbm [shape: bf16[1024,512], index: 0, kind: input, shape index: {}]
  %s1 = inlined_call_operand.vmem [shape: bf16[512,64], index: 1, kind: input, shape index: {}]
  %s2 = inlined_call_operand.vmem [shape: f32[1,64], index: 2, kind: input, shape index: {}]
  %s3 = inlined_call_operand.vmem [shape: f32[1,64], index: 3, kind: input, shape index: {}]
  %s4 = inlined_call_operand.<no memory space> [shape: f32[1,1], index: 4, kind: input, shape index: {}]
  %s5 = inlined_call_operand.hbm [shape: f32[2,1,512], index: 5, kind: output, shape index: {}]
  %s6 = sld [smem:[#allocation0]]
  $region57: #{tpu_custom_call.1} parent=0
    _
  %s8 = ssub.s32 1, %s6
  %s9 = scalar_select 0, %s8, %s6
  %v10 = vstv %s4
  %11 = vst [vmem:[#allocation2] sm:$0x1] %v10
  $region1: #{tpu_custom_call.1} parent=0
    #allocation3 [shape = 'u8[1048576]{0}', space=vmem, size = 0x100000, scoped, tag = 'input window, operand 0']
    #allocation4 [shape = 's32[2]{0}', space=sflag, size = 0x8, scoped, tag = 'scoped memory for tpu_custom_call.1']
    #allocation5 [shape = 's32[2]{0}', space=sflag, size = 0x8, scoped, tag = 'scoped memory for tpu_custom_call.1']
    #allocation6 [shape = 'u8[4096]{0}', space=vmem, size = 0x1000, scoped, tag = 'output window, operand 0']
    %12 = vsyncpa [#allocation4], 0
    %s13 = scalar_lea.sflag [#allocation4], 1
    %14 = vsyncpa %s13, 0
    %15 = vsyncpa [#allocation5], 0
    %s16 = scalar_lea.sflag [#allocation5], 1
    %17 = vsyncpa %s16, 0
    loop: start=0, step=1, limit=4
    $region2: #{tpu_custom_call.1} parent=1 // loop_pre_header
      _
    $region3: #{tpu_custom_call.1} parent=1 // loop_header
      %s19 = sphi 0, %s23
      %p20 = scmp.ge.s32.totalorder %s19, 4
      %s29 = sphi 0, %s31
      %s32 = sphi 0, %s29
      %s33 = sphi 0, %s32
      %s49 = sphi 0, %s33
      %s53 = sphi 0, %s53
      %s55 = sphi 0, %s53
      %s56 = sphi 0, %s55
      %s70 = sphi 0, %s56
      %s74 = sphi 0, %s74
      %s76 = sphi 0, %s74
      %s77 = sphi 0, %s76
      %s91 = sphi 0, %s77
      %s95 = sphi 0, %s95
      %s97 = sphi 0, %s95
      %s98 = sphi 0, %s97
      %s112 = sphi 0, %s98
      %s116 = sphi 0, %s116
      %s118 = sphi 0, %s116
      %s119 = sphi 0, %s118
      %s133 = sphi 0, %s119
      %s139 = sphi 0, %s141
      %s142 = sphi 0, %s139
      %s143 = sphi 0, %s142
      %s159 = sphi 0, %s143
    $region4: #{tpu_custom_call.1} parent=1 // loop_header_branch
      %22 = sbr.rel (%p20) target = $region8
    $region5: #{tpu_custom_call.1} parent=1 // loop_body
      %s24 = ssub.s32 %s19, 1
      %s25 = ssub.s32 %s19, 2
      %s26 = sadd.s32 %s19, 1
      %s27 = ssub.s32 %s19, %s26
      %p28 = scmp.eq.s32.totalorder %s27, 0
      %s30 = sadd.s32 %s29, 1
      %s31 = scalar_select %p28, %s29, %s30
      %p34 = pneg %p28
      %p35 = scmp.eq.s32.totalorder %s19, 1
      %p36 = por %p34, %p35
      %p37 = scmp.ne.s32.totalorder %s29, %s32
      %p38 = scmp.eq.s32.totalorder %s19, 0
      %p39 = por %p37, %p38
      %p40 = scmp.ne.s32.totalorder %s29, %s32
      %p41 = scmp.eq.s32.totalorder %s24, 1
      %p42 = por %p40, %p41
      %p43 = scmp.ne.s32.totalorder %s32, %s33
      %p44 = scmp.eq.s32.totalorder %s24, 0
      %p45 = por %p43, %p44
      %p46 = scmp.ne.s32.totalorder %s32, %s33
      %p47 = scmp.eq.s32.totalorder %s25, 1
      %p48 = por %p46, %p47
      %p50 = scmp.ne.s32.totalorder %s33, %s49
      %p51 = scmp.eq.s32.totalorder %s25, 0
      %p52 = por %p50, %p51
      %s54 = sadd.s32 %s53, 1
      %p57 = scmp.eq.s32.totalorder %s19, 1
      %p58 = scmp.ne.s32.totalorder %s53, %s55
      %p59 = scmp.eq.s32.totalorder %s19, 0
      %p60 = por %p58, %p59
      %p61 = scmp.ne.s32.totalorder %s53, %s55
      %p62 = scmp.eq.s32.totalorder %s24, 1
      %p63 = por %p61, %p62
      %p64 = scmp.ne.s32.totalorder %s55, %s56
      %p65 = scmp.eq.s32.totalorder %s24, 0
      %p66 = por %p64, %p65
      %p67 = scmp.ne.s32.totalorder %s55, %s56
      %p68 = scmp.eq.s32.totalorder %s25, 1
      %p69 = por %p67, %p68
      %p71 = scmp.ne.s32.totalorder %s56, %s70
      %p72 = scmp.eq.s32.totalorder %s25, 0
      %p73 = por %p71, %p72
      %s75 = sadd.s32 %s74, 1
      %p78 = scmp.eq.s32.totalorder %s19, 1
      %p79 = scmp.ne.s32.totalorder %s74, %s76
      %p80 = scmp.eq.s32.totalorder %s19, 0
      %p81 = por %p79, %p80
      %p82 = scmp.ne.s32.totalorder %s74, %s76
      %p83 = scmp.eq.s32.totalorder %s24, 1
      %p84 = por %p82, %p83
      %p85 = scmp.ne.s32.totalorder %s76, %s77
      %p86 = scmp.eq.s32.totalorder %s24, 0
      %p87 = por %p85, %p86
      %p88 = scmp.ne.s32.totalorder %s76, %s77
      %p89 = scmp.eq.s32.totalorder %s25, 1
      %p90 = por %p88, %p89
      %p92 = scmp.ne.s32.totalorder %s77, %s91
      %p93 = scmp.eq.s32.totalorder %s25, 0
      %p94 = por %p92, %p93
      %s96 = sadd.s32 %s95, 1
      %p99 = scmp.eq.s32.totalorder %s19, 1
      %p100 = scmp.ne.s32.totalorder %s95, %s97
      %p101 = scmp.eq.s32.totalorder %s19, 0
      %p102 = por %p100, %p101
      %p103 = scmp.ne.s32.totalorder %s95, %s97
      %p104 = scmp.eq.s32.totalorder %s24, 1
      %p105 = por %p103, %p104
      %p106 = scmp.ne.s32.totalorder %s97, %s98
      %p107 = scmp.eq.s32.totalorder %s24, 0
      %p108 = por %p106, %p107
      %p109 = scmp.ne.s32.totalorder %s97, %s98
      %p110 = scmp.eq.s32.totalorder %s25, 1
      %p111 = por %p109, %p110
      %p113 = scmp.ne.s32.totalorder %s98, %s112
      %p114 = scmp.eq.s32.totalorder %s25, 0
      %p115 = por %p113, %p114
      %s117 = sadd.s32 %s116, 1
      %p120 = scmp.eq.s32.totalorder %s19, 1
      %p121 = scmp.ne.s32.totalorder %s116, %s118
      %p122 = scmp.eq.s32.totalorder %s19, 0
      %p123 = por %p121, %p122
      %p124 = scmp.ne.s32.totalorder %s116, %s118
      %p125 = scmp.eq.s32.totalorder %s24, 1
      %p126 = por %p124, %p125
      %p127 = scmp.ne.s32.totalorder %s118, %s119
      %p128 = scmp.eq.s32.totalorder %s24, 0
      %p129 = por %p127, %p128
      %p130 = scmp.ne.s32.totalorder %s118, %s119
      %p131 = scmp.eq.s32.totalorder %s25, 1
      %p132 = por %p130, %p131
      %p134 = scmp.ne.s32.totalorder %s119, %s133
      %p135 = scmp.eq.s32.totalorder %s25, 0
      %p136 = por %p134, %p135
      %s137 = ssub.s32 %s19, %s26
      %p138 = scmp.eq.s32.totalorder %s137, 0
      %s140 = sadd.s32 %s139, 1
      %s141 = scalar_select %p138, %s139, %s140
      %p144 = pneg %p138
      %p145 = scmp.eq.s32.totalorder %s19, 1
      %p146 = por %p144, %p145
      %p147 = scmp.ne.s32.totalorder %s139, %s142
      %p148 = scmp.eq.s32.totalorder %s19, 0
      %p149 = por %p147, %p148
      %p150 = scmp.ne.s32.totalorder %s139, %s142
      %p151 = scmp.eq.s32.totalorder %s24, 1
      %p152 = por %p150, %p151
      %p153 = scmp.ne.s32.totalorder %s142, %s143
      %p154 = scmp.eq.s32.totalorder %s24, 0
      %p155 = por %p153, %p154
      %p156 = scmp.ne.s32.totalorder %s142, %s143
      %p157 = scmp.eq.s32.totalorder %s25, 1
      %p158 = por %p156, %p157
      %p160 = scmp.ne.s32.totalorder %s143, %s159
      %p161 = scmp.eq.s32.totalorder %s25, 0
      %p162 = por %p160, %p161
      %p163 = scmp.le.s32.totalorder 1, %s19
      %p164 = scmp.lt.s32.totalorder %s19, 3
      %p165 = pnand %p163, %p164
      %p166 = pneg %p165
      // Predicated region
      $region9: #{tpu_custom_call.1} parent=5 // pred_check
        _
      $region10: #{tpu_custom_call.1} parent=5 // pred_check_branch
        %168 = sbr.rel (%p165) target = $region12
      $region11: #{tpu_custom_call.1} parent=5 // pred_region
        %s169 = ssub.s32 %s19, 1
        // Predicated region
        $region13: #{tpu_custom_call.1} parent=11 // pred_check
          %p170 = pneg %p66
        $region14: #{tpu_custom_call.1} parent=11 // pred_check_branch
          %172 = sbr.rel (%p170) target = $region16
        $region15: #{tpu_custom_call.1} parent=11 // pred_region
          _
        $region16: #{tpu_custom_call.1} parent=11 // pred_fallthru
          _
        // Predicated region
        $region17: #{tpu_custom_call.1} parent=11 // pred_check
          %p173 = pneg %p87
        $region18: #{tpu_custom_call.1} parent=11 // pred_check_branch
          %175 = sbr.rel (%p173) target = $region20
        $region19: #{tpu_custom_call.1} parent=11 // pred_region
          _
        $region20: #{tpu_custom_call.1} parent=11 // pred_fallthru
          _
        // Predicated region
        $region21: #{tpu_custom_call.1} parent=11 // pred_check
          %p176 = pneg %p108
        $region22: #{tpu_custom_call.1} parent=11 // pred_check_branch
          %178 = sbr.rel (%p176) target = $region24
        $region23: #{tpu_custom_call.1} parent=11 // pred_region
          _
        $region24: #{tpu_custom_call.1} parent=11 // pred_fallthru
          _
        // Predicated region
        $region25: #{tpu_custom_call.1} parent=11 // pred_check
          %p179 = pneg %p129
        $region26: #{tpu_custom_call.1} parent=11 // pred_check_branch
          %181 = sbr.rel (%p179) target = $region28
        $region27: #{tpu_custom_call.1} parent=11 // pred_region
          _
        $region28: #{tpu_custom_call.1} parent=11 // pred_fallthru
          _
      $region12: #{tpu_custom_call.1} parent=5 // pred_fallthru
        _
      %p182 = scmp.lt.s32.totalorder %s19, 2
      // Predicated region
      $region29: #{tpu_custom_call.1} parent=5 // pred_check
        %p183 = pneg %p182
      $region30: #{tpu_custom_call.1} parent=5 // pred_check_branch
        %185 = sbr.rel (%p183) target = $region32
      $region31: #{tpu_custom_call.1} parent=5 // pred_region
        // Predicated region
        $region33: #{tpu_custom_call.1} parent=31 // pred_check
          %p186 = pneg %p39
        $region34: #{tpu_custom_call.1} parent=31 // pred_check_branch
          %188 = sbr.rel (%p186) target = $region36
        $region35: #{tpu_custom_call.1} parent=31 // pred_region
          %s189 = sand.u32 %s29, 1
          %s190 = scalar_lea.sflag [#allocation4], %s189
          %s191 = sand.u32 %s29, 1
          %s192 = smul.addr %s191, 1024
          %s193 = scalar_lea.vmem [#allocation3], %s192
          %s194 = smul.u32 64, %s19
          %s196 = ssub.s32 16384, 16384
          %197 = vsyncadd %s190, %s196
          %s198 = smul.addr %s194, 4
          %s199 = smul.addr %s198, 64
          %s200 = scalar_lea.hbm %s0, %s199
          %s201 = sshll.u32 %s193, 4
          %s202 = int_to_ptr.vmem [resolvable:$true] %s201
          %207 = dma.hbm_to_vmem [thread:$0]  %s200, 16384, %s202, %s190, 256, 256, 16
        $region36: #{tpu_custom_call.1} parent=31 // pred_fallthru
          _
      $region32: #{tpu_custom_call.1} parent=5 // pred_fallthru
        _
      %p208 = scmp.le.s32.totalorder 1, %s19
      %p209 = scmp.lt.s32.totalorder %s19, 3
      %p210 = pnand %p208, %p209
      %p211 = pneg %p210
      // Predicated region
      $region37: #{tpu_custom_call.1} parent=5 // pred_check
        _
      $region38: #{tpu_custom_call.1} parent=5 // pred_check_branch
        %213 = sbr.rel (%p210) target = $region40
      $region39: #{tpu_custom_call.1} parent=5 // pred_region
        %s214 = ssub.s32 %s19, 1
        %s215 = sand.u32 %s32, 1
        %s216 = scalar_lea.sflag [#allocation4], %s215
        %s217 = sand.u32 %s32, 1
        %s218 = smul.addr %s217, 1024
        %s219 = scalar_lea.vmem [#allocation3], %s218
        // Predicated region
        $region41: #{tpu_custom_call.1} parent=39 // pred_check
          %p220 = pneg %p45
        $region42: #{tpu_custom_call.1} parent=39 // pred_check_branch
          %222 = sbr.rel (%p220) target = $region44
        $region43: #{tpu_custom_call.1} parent=39 // pred_region
          %223 = dma.done %s216, 16384
        $region44: #{tpu_custom_call.1} parent=39 // pred_fallthru
          _
        %s224 = sand.u32 %s32, 1
        %s225 = scalar_lea.sflag [#allocation4], %s224
        %s226 = sand.u32 %s32, 1
        %s227 = smul.addr %s226, 1024
        %s228 = scalar_lea.vmem [#allocation3], %s227
        %p229 = pneg %p45
        %p230 = pneg %p42
        %p231 = pneg %p66
        %p232 = pneg %p63
        %p233 = pneg %p87
        %p234 = pneg %p84
        %p235 = pneg %p108
        %p236 = pneg %p105
        %p237 = pneg %p129
        %p238 = pneg %p126
        %p239 = pneg %p155
        %p240 = pneg %p152
        %s241 = sand.u32 %s142, 1
        %s242 = scalar_lea.sflag [#allocation5], %s241
        %s243 = sand.u32 %s142, 1
        %s244 = smul.addr %s243, 4
        %s245 = scalar_lea.vmem [#allocation6], %s244
        %s246 = smul.u32 64, %s24
        %v248 = vld [vmem:[%s219] sm:$0xff]
        %v249 = vld [vmem:[%s219 + $0x8] sm:$0xff]
        %v250 = vld [vmem:[%s219 + $0x10] sm:$0xff]
        %v251 = vld [vmem:[%s219 + $0x18] sm:$0xff]
        %v252 = vld [vmem:[%s219 + $0x20] sm:$0xff]
        %v253 = vld [vmem:[%s219 + $0x28] sm:$0xff]
        %v254 = vld [vmem:[%s219 + $0x30] sm:$0xff]
        %v255 = vld [vmem:[%s219 + $0x38] sm:$0xff]
        %v256 = vld [vmem:[%s219 + $0x40] sm:$0xff]
        %v257 = vld [vmem:[%s219 + $0x48] sm:$0xff]
        %v258 = vld [vmem:[%s219 + $0x50] sm:$0xff]
        %v259 = vld [vmem:[%s219 + $0x58] sm:$0xff]
        %v260 = vld [vmem:[%s219 + $0x60] sm:$0xff]
        %v261 = vld [vmem:[%s219 + $0x68] sm:$0xff]
        %v262 = vld [vmem:[%s219 + $0x70] sm:$0xff]
        %v263 = vld [vmem:[%s219 + $0x78] sm:$0xff]
        %v264 = vld [vmem:[%s219 + $0x80] sm:$0xff]
        %v265 = vld [vmem:[%s219 + $0x88] sm:$0xff]
        %v266 = vld [vmem:[%s219 + $0x90] sm:$0xff]
        %v267 = vld [vmem:[%s219 + $0x98] sm:$0xff]
        %v268 = vld [vmem:[%s219 + $0xa0] sm:$0xff]
        %v269 = vld [vmem:[%s219 + $0xa8] sm:$0xff]
        %v270 = vld [vmem:[%s219 + $0xb0] sm:$0xff]
        %v271 = vld [vmem:[%s219 + $0xb8] sm:$0xff]
        %v272 = vld [vmem:[%s219 + $0xc0] sm:$0xff]
        %v273 = vld [vmem:[%s219 + $0xc8] sm:$0xff]
        %v274 = vld [vmem:[%s219 + $0xd0] sm:$0xff]
        %v275 = vld [vmem:[%s219 + $0xd8] sm:$0xff]
        %v276 = vld [vmem:[%s219 + $0xe0] sm:$0xff]
        %v277 = vld [vmem:[%s219 + $0xe8] sm:$0xff]
        %v278 = vld [vmem:[%s219 + $0xf0] sm:$0xff]
        %v279 = vld [vmem:[%s219 + $0xf8] sm:$0xff]
        %v280 = vld [vmem:[%s219 + $0x100] sm:$0xff]
        %v281 = vld [vmem:[%s219 + $0x108] sm:$0xff]
        %v282 = vld [vmem:[%s219 + $0x110] sm:$0xff]
        %v283 = vld [vmem:[%s219 + $0x118] sm:$0xff]
        %v284 = vld [vmem:[%s219 + $0x120] sm:$0xff]
        %v285 = vld [vmem:[%s219 + $0x128] sm:$0xff]
        %v286 = vld [vmem:[%s219 + $0x130] sm:$0xff]
        %v287 = vld [vmem:[%s219 + $0x138] sm:$0xff]
        %v288 = vld [vmem:[%s219 + $0x140] sm:$0xff]
        %v289 = vld [vmem:[%s219 + $0x148] sm:$0xff]
        %v290 = vld [vmem:[%s219 + $0x150] sm:$0xff]
        %v291 = vld [vmem:[%s219 + $0x158] sm:$0xff]
        %v292 = vld [vmem:[%s219 + $0x160] sm:$0xff]
        %v293 = vld [vmem:[%s219 + $0x168] sm:$0xff]
        %v294 = vld [vmem:[%s219 + $0x170] sm:$0xff]
        %v295 = vld [vmem:[%s219 + $0x178] sm:$0xff]
        %v296 = vld [vmem:[%s219 + $0x180] sm:$0xff]
        %v297 = vld [vmem:[%s219 + $0x188] sm:$0xff]
        %v298 = vld [vmem:[%s219 + $0x190] sm:$0xff]
        %v299 = vld [vmem:[%s219 + $0x198] sm:$0xff]
        %v300 = vld [vmem:[%s219 + $0x1a0] sm:$0xff]
        %v301 = vld [vmem:[%s219 + $0x1a8] sm:$0xff]
        %v302 = vld [vmem:[%s219 + $0x1b0] sm:$0xff]
        %v303 = vld [vmem:[%s219 + $0x1b8] sm:$0xff]
        %v304 = vld [vmem:[%s219 + $0x1c0] sm:$0xff]
        %v305 = vld [vmem:[%s219 + $0x1c8] sm:$0xff]
        %v306 = vld [vmem:[%s219 + $0x1d0] sm:$0xff]
        %v307 = vld [vmem:[%s219 + $0x1d8] sm:$0xff]
        %v308 = vld [vmem:[%s219 + $0x1e0] sm:$0xff]
        %v309 = vld [vmem:[%s219 + $0x1e8] sm:$0xff]
        %v310 = vld [vmem:[%s219 + $0x1f0] sm:$0xff]
        %v311 = vld [vmem:[%s219 + $0x1f8] sm:$0xff]
        %v312 = vld [vmem:[%s219 + $0x200] sm:$0xff]
        %v313 = vld [vmem:[%s219 + $0x208] sm:$0xff]
        %v314 = vld [vmem:[%s219 + $0x210] sm:$0xff]
        %v315 = vld [vmem:[%s219 + $0x218] sm:$0xff]
        %v316 = vld [vmem:[%s219 + $0x220] sm:$0xff]
        %v317 = vld [vmem:[%s219 + $0x228] sm:$0xff]
        %v318 = vld [vmem:[%s219 + $0x230] sm:$0xff]
        %v319 = vld [vmem:[%s219 + $0x238] sm:$0xff]
        %v320 = vld [vmem:[%s219 + $0x240] sm:$0xff]
        %v321 = vld [vmem:[%s219 + $0x248] sm:$0xff]
        %v322 = vld [vmem:[%s219 + $0x250] sm:$0xff]
        %v323 = vld [vmem:[%s219 + $0x258] sm:$0xff]
        %v324 = vld [vmem:[%s219 + $0x260] sm:$0xff]
        %v325 = vld [vmem:[%s219 + $0x268] sm:$0xff]
        %v326 = vld [vmem:[%s219 + $0x270] sm:$0xff]
        %v327 = vld [vmem:[%s219 + $0x278] sm:$0xff]
        %v328 = vld [vmem:[%s219 + $0x280] sm:$0xff]
        %v329 = vld [vmem:[%s219 + $0x288] sm:$0xff]
        %v330 = vld [vmem:[%s219 + $0x290] sm:$0xff]
        %v331 = vld [vmem:[%s219 + $0x298] sm:$0xff]
        %v332 = vld [vmem:[%s219 + $0x2a0] sm:$0xff]
        %v333 = vld [vmem:[%s219 + $0x2a8] sm:$0xff]
        %v334 = vld [vmem:[%s219 + $0x2b0] sm:$0xff]
        %v335 = vld [vmem:[%s219 + $0x2b8] sm:$0xff]
        %v336 = vld [vmem:[%s219 + $0x2c0] sm:$0xff]
        %v337 = vld [vmem:[%s219 + $0x2c8] sm:$0xff]
        %v338 = vld [vmem:[%s219 + $0x2d0] sm:$0xff]
        %v339 = vld [vmem:[%s219 + $0x2d8] sm:$0xff]
        %v340 = vld [vmem:[%s219 + $0x2e0] sm:$0xff]
        %v341 = vld [vmem:[%s219 + $0x2e8] sm:$0xff]
        %v342 = vld [vmem:[%s219 + $0x2f0] sm:$0xff]
        %v343 = vld [vmem:[%s219 + $0x2f8] sm:$0xff]
        %v344 = vld [vmem:[%s219 + $0x300] sm:$0xff]
        %v345 = vld [vmem:[%s219 + $0x308] sm:$0xff]
        %v346 = vld [vmem:[%s219 + $0x310] sm:$0xff]
        %v347 = vld [vmem:[%s219 + $0x318] sm:$0xff]
        %v348 = vld [vmem:[%s219 + $0x320] sm:$0xff]
        %v349 = vld [vmem:[%s219 + $0x328] sm:$0xff]
        %v350 = vld [vmem:[%s219 + $0x330] sm:$0xff]
        %v351 = vld [vmem:[%s219 + $0x338] sm:$0xff]
        %v352 = vld [vmem:[%s219 + $0x340] sm:$0xff]
        %v353 = vld [vmem:[%s219 + $0x348] sm:$0xff]
        %v354 = vld [vmem:[%s219 + $0x350] sm:$0xff]
        %v355 = vld [vmem:[%s219 + $0x358] sm:$0xff]
        %v356 = vld [vmem:[%s219 + $0x360] sm:$0xff]
        %v357 = vld [vmem:[%s219 + $0x368] sm:$0xff]
        %v358 = vld [vmem:[%s219 + $0x370] sm:$0xff]
        %v359 = vld [vmem:[%s219 + $0x378] sm:$0xff]
        %v360 = vld [vmem:[%s219 + $0x380] sm:$0xff]
        %v361 = vld [vmem:[%s219 + $0x388] sm:$0xff]
        %v362 = vld [vmem:[%s219 + $0x390] sm:$0xff]
        %v363 = vld [vmem:[%s219 + $0x398] sm:$0xff]
        %v364 = vld [vmem:[%s219 + $0x3a0] sm:$0xff]
        %v365 = vld [vmem:[%s219 + $0x3a8] sm:$0xff]
        %v366 = vld [vmem:[%s219 + $0x3b0] sm:$0xff]
        %v367 = vld [vmem:[%s219 + $0x3b8] sm:$0xff]
        %v368 = vld [vmem:[%s219 + $0x3c0] sm:$0xff]
        %v369 = vld [vmem:[%s219 + $0x3c8] sm:$0xff]
        %v370 = vld [vmem:[%s219 + $0x3d0] sm:$0xff]
        %v371 = vld [vmem:[%s219 + $0x3d8] sm:$0xff]
        %v372 = vld [vmem:[%s219 + $0x3e0] sm:$0xff]
        %v373 = vld [vmem:[%s219 + $0x3e8] sm:$0xff]
        %v374 = vld [vmem:[%s219 + $0x3f0] sm:$0xff]
        %v375 = vld [vmem:[%s219 + $0x3f8] sm:$0xff]
        %v376 = vld [vmem:[%s1] sm:$0xf]
        %v377 = vld [vmem:[%s1 + $0x4] sm:$0xf]
        %v378 = vld [vmem:[%s1 + $0x8] sm:$0xf]
        %v379 = vld [vmem:[%s1 + $0xc] sm:$0xf]
        %v380 = vld [vmem:[%s1 + $0x10] sm:$0xf]
        %v381 = vld [vmem:[%s1 + $0x14] sm:$0xf]
        %v382 = vld [vmem:[%s1 + $0x18] sm:$0xf]
        %v383 = vld [vmem:[%s1 + $0x1c] sm:$0xf]
        %v384 = vld [vmem:[%s1 + $0x20] sm:$0xf]
        %v385 = vld [vmem:[%s1 + $0x24] sm:$0xf]
        %v386 = vld [vmem:[%s1 + $0x28] sm:$0xf]
        %v387 = vld [vmem:[%s1 + $0x2c] sm:$0xf]
        %v388 = vld [vmem:[%s1 + $0x30] sm:$0xf]
        %v389 = vld [vmem:[%s1 + $0x34] sm:$0xf]
        %v390 = vld [vmem:[%s1 + $0x38] sm:$0xf]
        %v391 = vld [vmem:[%s1 + $0x3c] sm:$0xf]
        %v392 = vld [vmem:[%s1 + $0x40] sm:$0xf]
        %v393 = vld [vmem:[%s1 + $0x44] sm:$0xf]
        %v394 = vld [vmem:[%s1 + $0x48] sm:$0xf]
        %v395 = vld [vmem:[%s1 + $0x4c] sm:$0xf]
        %v396 = vld [vmem:[%s1 + $0x50] sm:$0xf]
        %v397 = vld [vmem:[%s1 + $0x54] sm:$0xf]
        %v398 = vld [vmem:[%s1 + $0x58] sm:$0xf]
        %v399 = vld [vmem:[%s1 + $0x5c] sm:$0xf]
        %v400 = vld [vmem:[%s1 + $0x60] sm:$0xf]
        %v401 = vld [vmem:[%s1 + $0x64] sm:$0xf]
        %v402 = vld [vmem:[%s1 + $0x68] sm:$0xf]
        %v403 = vld [vmem:[%s1 + $0x6c] sm:$0xf]
        %v404 = vld [vmem:[%s1 + $0x70] sm:$0xf]
        %v405 = vld [vmem:[%s1 + $0x74] sm:$0xf]
        %v406 = vld [vmem:[%s1 + $0x78] sm:$0xf]
        %v407 = vld [vmem:[%s1 + $0x7c] sm:$0xf]
        %v408 = vld [vmem:[%s1 + $0x80] sm:$0xf]
        %v409 = vld [vmem:[%s1 + $0x84] sm:$0xf]
        %v410 = vld [vmem:[%s1 + $0x88] sm:$0xf]
        %v411 = vld [vmem:[%s1 + $0x8c] sm:$0xf]
        %v412 = vld [vmem:[%s1 + $0x90] sm:$0xf]
        %v413 = vld [vmem:[%s1 + $0x94] sm:$0xf]
        %v414 = vld [vmem:[%s1 + $0x98] sm:$0xf]
        %v415 = vld [vmem:[%s1 + $0x9c] sm:$0xf]
        %v416 = vld [vmem:[%s1 + $0xa0] sm:$0xf]
        %v417 = vld [vmem:[%s1 + $0xa4] sm:$0xf]
        %v418 = vld [vmem:[%s1 + $0xa8] sm:$0xf]
        %v419 = vld [vmem:[%s1 + $0xac] sm:$0xf]
        %v420 = vld [vmem:[%s1 + $0xb0] sm:$0xf]
        %v421 = vld [vmem:[%s1 + $0xb4] sm:$0xf]
        %v422 = vld [vmem:[%s1 + $0xb8] sm:$0xf]
        %v423 = vld [vmem:[%s1 + $0xbc] sm:$0xf]
        %v424 = vld [vmem:[%s1 + $0xc0] sm:$0xf]
        %v425 = vld [vmem:[%s1 + $0xc4] sm:$0xf]
        %v426 = vld [vmem:[%s1 + $0xc8] sm:$0xf]
        %v427 = vld [vmem:[%s1 + $0xcc] sm:$0xf]
        %v428 = vld [vmem:[%s1 + $0xd0] sm:$0xf]
        %v429 = vld [vmem:[%s1 + $0xd4] sm:$0xf]
        %v430 = vld [vmem:[%s1 + $0xd8] sm:$0xf]
        %v431 = vld [vmem:[%s1 + $0xdc] sm:$0xf]
        %v432 = vld [vmem:[%s1 + $0xe0] sm:$0xf]
        %v433 = vld [vmem:[%s1 + $0xe4] sm:$0xf]
        %v434 = vld [vmem:[%s1 + $0xe8] sm:$0xf]
        %v435 = vld [vmem:[%s1 + $0xec] sm:$0xf]
        %v436 = vld [vmem:[%s1 + $0xf0] sm:$0xf]
        %v437 = vld [vmem:[%s1 + $0xf4] sm:$0xf]
        %v438 = vld [vmem:[%s1 + $0xf8] sm:$0xf]
        %v439 = vld [vmem:[%s1 + $0xfc] sm:$0xf]
        %v440 = vld [vmem:[%s2] sm:$0x1]
        %v442 = vlaneseq
        %v443 = vshrl.u32 %v442, 7
        %v444 = vsub.s32 0, %v443
        %v445 = vrot.slane %v440, %v444
        %v575 = vunpack.c.l.b16 %v248
        %v576 = vunpack.c.h.b16 %v248
        %v577 = vunpack.c.l.b16 %v249
        %v578 = vunpack.c.h.b16 %v249
        %v579 = vunpack.c.l.b16 %v250
        %v580 = vunpack.c.h.b16 %v250
        %v581 = vunpack.c.l.b16 %v251
        %v582 = vunpack.c.h.b16 %v251
        %v583 = vunpack.c.l.b16 %v252
        %v584 = vunpack.c.h.b16 %v252
        %v585 = vunpack.c.l.b16 %v253
        %v586 = vunpack.c.h.b16 %v253
        %v587 = vunpack.c.l.b16 %v254
        %v588 = vunpack.c.h.b16 %v254
        %v589 = vunpack.c.l.b16 %v255
        %v590 = vunpack.c.h.b16 %v255
        %v591 = vunpack.c.l.b16 %v256
        %v592 = vunpack.c.h.b16 %v256
        %v593 = vunpack.c.l.b16 %v257
        %v594 = vunpack.c.h.b16 %v257
        %v595 = vunpack.c.l.b16 %v258
        %v596 = vunpack.c.h.b16 %v258
        %v597 = vunpack.c.l.b16 %v259
        %v598 = vunpack.c.h.b16 %v259
        %v599 = vunpack.c.l.b16 %v260
        %v600 = vunpack.c.h.b16 %v260
        %v601 = vunpack.c.l.b16 %v261
        %v602 = vunpack.c.h.b16 %v261
        %v603 = vunpack.c.l.b16 %v262
        %v604 = vunpack.c.h.b16 %v262
        %v605 = vunpack.c.l.b16 %v263
        %v606 = vunpack.c.h.b16 %v263
        %v607 = vunpack.c.l.b16 %v264
        %v608 = vunpack.c.h.b16 %v264
        %v609 = vunpack.c.l.b16 %v265
        %v610 = vunpack.c.h.b16 %v265
        %v611 = vunpack.c.l.b16 %v266
        %v612 = vunpack.c.h.b16 %v266
        %v613 = vunpack.c.l.b16 %v267
        %v614 = vunpack.c.h.b16 %v267
        %v615 = vunpack.c.l.b16 %v268
        %v616 = vunpack.c.h.b16 %v268
        %v617 = vunpack.c.l.b16 %v269
        %v618 = vunpack.c.h.b16 %v269
        %v619 = vunpack.c.l.b16 %v270
        %v620 = vunpack.c.h.b16 %v270
        %v621 = vunpack.c.l.b16 %v271
        %v622 = vunpack.c.h.b16 %v271
        %v623 = vunpack.c.l.b16 %v272
        %v624 = vunpack.c.h.b16 %v272
        %v625 = vunpack.c.l.b16 %v273
        %v626 = vunpack.c.h.b16 %v273
        %v627 = vunpack.c.l.b16 %v274
        %v628 = vunpack.c.h.b16 %v274
        %v629 = vunpack.c.l.b16 %v275
        %v630 = vunpack.c.h.b16 %v275
        %v631 = vunpack.c.l.b16 %v276
        %v632 = vunpack.c.h.b16 %v276
        %v633 = vunpack.c.l.b16 %v277
        %v634 = vunpack.c.h.b16 %v277
        %v635 = vunpack.c.l.b16 %v278
        %v636 = vunpack.c.h.b16 %v278
        %v637 = vunpack.c.l.b16 %v279
        %v638 = vunpack.c.h.b16 %v279
        %v639 = vunpack.c.l.b16 %v280
        %v640 = vunpack.c.h.b16 %v280
        %v641 = vunpack.c.l.b16 %v281
        %v642 = vunpack.c.h.b16 %v281
        %v643 = vunpack.c.l.b16 %v282
        %v644 = vunpack.c.h.b16 %v282
        %v645 = vunpack.c.l.b16 %v283
        %v646 = vunpack.c.h.b16 %v283
        %v647 = vunpack.c.l.b16 %v284
        %v648 = vunpack.c.h.b16 %v284
        %v649 = vunpack.c.l.b16 %v285
        %v650 = vunpack.c.h.b16 %v285
        %v651 = vunpack.c.l.b16 %v286
        %v652 = vunpack.c.h.b16 %v286
        %v653 = vunpack.c.l.b16 %v287
        %v654 = vunpack.c.h.b16 %v287
        %v655 = vunpack.c.l.b16 %v288
        %v656 = vunpack.c.h.b16 %v288
        %v657 = vunpack.c.l.b16 %v289
        %v658 = vunpack.c.h.b16 %v289
        %v659 = vunpack.c.l.b16 %v290
        %v660 = vunpack.c.h.b16 %v290
        %v661 = vunpack.c.l.b16 %v291
        %v662 = vunpack.c.h.b16 %v291
        %v663 = vunpack.c.l.b16 %v292
        %v664 = vunpack.c.h.b16 %v292
        %v665 = vunpack.c.l.b16 %v293
        %v666 = vunpack.c.h.b16 %v293
        %v667 = vunpack.c.l.b16 %v294
        %v668 = vunpack.c.h.b16 %v294
        %v669 = vunpack.c.l.b16 %v295
        %v670 = vunpack.c.h.b16 %v295
        %v671 = vunpack.c.l.b16 %v296
        %v672 = vunpack.c.h.b16 %v296
        %v673 = vunpack.c.l.b16 %v297
        %v674 = vunpack.c.h.b16 %v297
        %v675 = vunpack.c.l.b16 %v298
        %v676 = vunpack.c.h.b16 %v298
        %v677 = vunpack.c.l.b16 %v299
        %v678 = vunpack.c.h.b16 %v299
        %v679 = vunpack.c.l.b16 %v300
        %v680 = vunpack.c.h.b16 %v300
        %v681 = vunpack.c.l.b16 %v301
        %v682 = vunpack.c.h.b16 %v301
        %v683 = vunpack.c.l.b16 %v302
        %v684 = vunpack.c.h.b16 %v302
        %v685 = vunpack.c.l.b16 %v303
        %v686 = vunpack.c.h.b16 %v303
        %v687 = vunpack.c.l.b16 %v304
        %v688 = vunpack.c.h.b16 %v304
        %v689 = vunpack.c.l.b16 %v305
        %v690 = vunpack.c.h.b16 %v305
        %v691 = vunpack.c.l.b16 %v306
        %v692 = vunpack.c.h.b16 %v306
        %v693 = vunpack.c.l.b16 %v307
        %v694 = vunpack.c.h.b16 %v307
        %v695 = vunpack.c.l.b16 %v308
        %v696 = vunpack.c.h.b16 %v308
        %v697 = vunpack.c.l.b16 %v309
        %v698 = vunpack.c.h.b16 %v309
        %v699 = vunpack.c.l.b16 %v310
        %v700 = vunpack.c.h.b16 %v310
        %v701 = vunpack.c.l.b16 %v311
        %v702 = vunpack.c.h.b16 %v311
        %v703 = vunpack.c.l.b16 %v312
        %v704 = vunpack.c.h.b16 %v312
        %v705 = vunpack.c.l.b16 %v313
        %v706 = vunpack.c.h.b16 %v313
        %v707 = vunpack.c.l.b16 %v314
        %v708 = vunpack.c.h.b16 %v314
        %v709 = vunpack.c.l.b16 %v315
        %v710 = vunpack.c.h.b16 %v315
        %v711 = vunpack.c.l.b16 %v316
        %v712 = vunpack.c.h.b16 %v316
        %v713 = vunpack.c.l.b16 %v317
        %v714 = vunpack.c.h.b16 %v317
        %v715 = vunpack.c.l.b16 %v318
        %v716 = vunpack.c.h.b16 %v318
        %v717 = vunpack.c.l.b16 %v319
        %v718 = vunpack.c.h.b16 %v319
        %v719 = vunpack.c.l.b16 %v320
        %v720 = vunpack.c.h.b16 %v320
        %v721 = vunpack.c.l.b16 %v321
        %v722 = vunpack.c.h.b16 %v321
        %v723 = vunpack.c.l.b16 %v322
        %v724 = vunpack.c.h.b16 %v322
        %v725 = vunpack.c.l.b16 %v323
        %v726 = vunpack.c.h.b16 %v323
        %v727 = vunpack.c.l.b16 %v324
        %v728 = vunpack.c.h.b16 %v324
        %v729 = vunpack.c.l.b16 %v325
        %v730 = vunpack.c.h.b16 %v325
        %v731 = vunpack.c.l.b16 %v326
        %v732 = vunpack.c.h.b16 %v326
        %v733 = vunpack.c.l.b16 %v327
        %v734 = vunpack.c.h.b16 %v327
        %v735 = vunpack.c.l.b16 %v328
        %v736 = vunpack.c.h.b16 %v328
        %v737 = vunpack.c.l.b16 %v329
        %v738 = vunpack.c.h.b16 %v329
        %v739 = vunpack.c.l.b16 %v330
        %v740 = vunpack.c.h.b16 %v330
        %v741 = vunpack.c.l.b16 %v331
        %v742 = vunpack.c.h.b16 %v331
        %v743 = vunpack.c.l.b16 %v332
        %v744 = vunpack.c.h.b16 %v332
        %v745 = vunpack.c.l.b16 %v333
        %v746 = vunpack.c.h.b16 %v333
        %v747 = vunpack.c.l.b16 %v334
        %v748 = vunpack.c.h.b16 %v334
        %v749 = vunpack.c.l.b16 %v335
        %v750 = vunpack.c.h.b16 %v335
        %v751 = vunpack.c.l.b16 %v336
        %v752 = vunpack.c.h.b16 %v336
        %v753 = vunpack.c.l.b16 %v337
        %v754 = vunpack.c.h.b16 %v337
        %v755 = vunpack.c.l.b16 %v338
        %v756 = vunpack.c.h.b16 %v338
        %v757 = vunpack.c.l.b16 %v339
        %v758 = vunpack.c.h.b16 %v339
        %v759 = vunpack.c.l.b16 %v340
        %v760 = vunpack.c.h.b16 %v340
        %v761 = vunpack.c.l.b16 %v341
        %v762 = vunpack.c.h.b16 %v341
        %v763 = vunpack.c.l.b16 %v342
        %v764 = vunpack.c.h.b16 %v342
        %v765 = vunpack.c.l.b16 %v343
        %v766 = vunpack.c.h.b16 %v343
        %v767 = vunpack.c.l.b16 %v344
        %v768 = vunpack.c.h.b16 %v344
        %v769 = vunpack.c.l.b16 %v345
        %v770 = vunpack.c.h.b16 %v345
        %v771 = vunpack.c.l.b16 %v346
        %v772 = vunpack.c.h.b16 %v346
        %v773 = vunpack.c.l.b16 %v347
        %v774 = vunpack.c.h.b16 %v347
        %v775 = vunpack.c.l.b16 %v348
        %v776 = vunpack.c.h.b16 %v348
        %v777 = vunpack.c.l.b16 %v349
        %v778 = vunpack.c.h.b16 %v349
        %v779 = vunpack.c.l.b16 %v350
        %v780 = vunpack.c.h.b16 %v350
        %v781 = vunpack.c.l.b16 %v351
        %v782 = vunpack.c.h.b16 %v351
        %v783 = vunpack.c.l.b16 %v352
        %v784 = vunpack.c.h.b16 %v352
        %v785 = vunpack.c.l.b16 %v353
        %v786 = vunpack.c.h.b16 %v353
        %v787 = vunpack.c.l.b16 %v354
        %v788 = vunpack.c.h.b16 %v354
        %v789 = vunpack.c.l.b16 %v355
        %v790 = vunpack.c.h.b16 %v355
        %v791 = vunpack.c.l.b16 %v356
        %v792 = vunpack.c.h.b16 %v356
        %v793 = vunpack.c.l.b16 %v357
        %v794 = vunpack.c.h.b16 %v357
        %v795 = vunpack.c.l.b16 %v358
        %v796 = vunpack.c.h.b16 %v358
        %v797 = vunpack.c.l.b16 %v359
        %v798 = vunpack.c.h.b16 %v359
        %v799 = vunpack.c.l.b16 %v360
        %v800 = vunpack.c.h.b16 %v360
        %v801 = vunpack.c.l.b16 %v361
        %v802 = vunpack.c.h.b16 %v361
        %v803 = vunpack.c.l.b16 %v362
        %v804 = vunpack.c.h.b16 %v362
        %v805 = vunpack.c.l.b16 %v363
        %v806 = vunpack.c.h.b16 %v363
        %v807 = vunpack.c.l.b16 %v364
        %v808 = vunpack.c.h.b16 %v364
        %v809 = vunpack.c.l.b16 %v365
        %v810 = vunpack.c.h.b16 %v365
        %v811 = vunpack.c.l.b16 %v366
        %v812 = vunpack.c.h.b16 %v366
        %v813 = vunpack.c.l.b16 %v367
        %v814 = vunpack.c.h.b16 %v367
        %v815 = vunpack.c.l.b16 %v368
        %v816 = vunpack.c.h.b16 %v368
        %v817 = vunpack.c.l.b16 %v369
        %v818 = vunpack.c.h.b16 %v369
        %v819 = vunpack.c.l.b16 %v370
        %v820 = vunpack.c.h.b16 %v370
        %v821 = vunpack.c.l.b16 %v371
        %v822 = vunpack.c.h.b16 %v371
        %v823 = vunpack.c.l.b16 %v372
        %v824 = vunpack.c.h.b16 %v372
        %v825 = vunpack.c.l.b16 %v373
        %v826 = vunpack.c.h.b16 %v373
        %v827 = vunpack.c.l.b16 %v374
        %v828 = vunpack.c.h.b16 %v374
        %v829 = vunpack.c.l.b16 %v375
        %v830 = vunpack.c.h.b16 %v375
        %v831 = vpack.c.b16 %v579, %v575
        %v832 = vpack.c.b16 %v580, %v576
        %v833 = vpack.c.b16 %v581, %v577
        %v834 = vpack.c.b16 %v582, %v578
        %v835 = vpack.c.b16 %v587, %v583
        %v836 = vpack.c.b16 %v588, %v584
        %v837 = vpack.c.b16 %v589, %v585
        %v838 = vpack.c.b16 %v590, %v586
        %v839 = vpack.c.b16 %v595, %v591
        %v840 = vpack.c.b16 %v596, %v592
        %v841 = vpack.c.b16 %v597, %v593
        %v842 = vpack.c.b16 %v598, %v594
        %v843 = vpack.c.b16 %v603, %v599
        %v844 = vpack.c.b16 %v604, %v600
        %v845 = vpack.c.b16 %v605, %v601
        %v846 = vpack.c.b16 %v606, %v602
        %v847 = vpack.c.b16 %v611, %v607
        %v848 = vpack.c.b16 %v612, %v608
        %v849 = vpack.c.b16 %v613, %v609
        %v850 = vpack.c.b16 %v614, %v610
        %v851 = vpack.c.b16 %v619, %v615
        %v852 = vpack.c.b16 %v620, %v616
        %v853 = vpack.c.b16 %v621, %v617
        %v854 = vpack.c.b16 %v622, %v618
        %v855 = vpack.c.b16 %v627, %v623
        %v856 = vpack.c.b16 %v628, %v624
        %v857 = vpack.c.b16 %v629, %v625
        %v858 = vpack.c.b16 %v630, %v626
        %v859 = vpack.c.b16 %v635, %v631
        %v860 = vpack.c.b16 %v636, %v632
        %v861 = vpack.c.b16 %v637, %v633
        %v862 = vpack.c.b16 %v638, %v634
        %v863 = vpack.c.b16 %v643, %v639
        %v864 = vpack.c.b16 %v644, %v640
        %v865 = vpack.c.b16 %v645, %v641
        %v866 = vpack.c.b16 %v646, %v642
        %v867 = vpack.c.b16 %v651, %v647
        %v868 = vpack.c.b16 %v652, %v648
        %v869 = vpack.c.b16 %v653, %v649
        %v870 = vpack.c.b16 %v654, %v650
        %v871 = vpack.c.b16 %v659, %v655
        %v872 = vpack.c.b16 %v660, %v656
        %v873 = vpack.c.b16 %v661, %v657
        %v874 = vpack.c.b16 %v662, %v658
        %v875 = vpack.c.b16 %v667, %v663
        %v876 = vpack.c.b16 %v668, %v664
        %v877 = vpack.c.b16 %v669, %v665
        %v878 = vpack.c.b16 %v670, %v666
        %v879 = vpack.c.b16 %v675, %v671
        %v880 = vpack.c.b16 %v676, %v672
        %v881 = vpack.c.b16 %v677, %v673
        %v882 = vpack.c.b16 %v678, %v674
        %v883 = vpack.c.b16 %v683, %v679
        %v884 = vpack.c.b16 %v684, %v680
        %v885 = vpack.c.b16 %v685, %v681
        %v886 = vpack.c.b16 %v686, %v682
        %v887 = vpack.c.b16 %v691, %v687
        %v888 = vpack.c.b16 %v692, %v688
        %v889 = vpack.c.b16 %v693, %v689
        %v890 = vpack.c.b16 %v694, %v690
        %v891 = vpack.c.b16 %v699, %v695
        %v892 = vpack.c.b16 %v700, %v696
        %v893 = vpack.c.b16 %v701, %v697
        %v894 = vpack.c.b16 %v702, %v698
        %v895 = vpack.c.b16 %v707, %v703
        %v896 = vpack.c.b16 %v708, %v704
        %v897 = vpack.c.b16 %v709, %v705
        %v898 = vpack.c.b16 %v710, %v706
        %v899 = vpack.c.b16 %v715, %v711
        %v900 = vpack.c.b16 %v716, %v712
        %v901 = vpack.c.b16 %v717, %v713
        %v902 = vpack.c.b16 %v718, %v714
        %v903 = vpack.c.b16 %v723, %v719
        %v904 = vpack.c.b16 %v724, %v720
        %v905 = vpack.c.b16 %v725, %v721
        %v906 = vpack.c.b16 %v726, %v722
        %v907 = vpack.c.b16 %v731, %v727
        %v908 = vpack.c.b16 %v732, %v728
        %v909 = vpack.c.b16 %v733, %v729
        %v910 = vpack.c.b16 %v734, %v730
        %v911 = vpack.c.b16 %v739, %v735
        %v912 = vpack.c.b16 %v740, %v736
        %v913 = vpack.c.b16 %v741, %v737
        %v914 = vpack.c.b16 %v742, %v738
        %v915 = vpack.c.b16 %v747, %v743
        %v916 = vpack.c.b16 %v748, %v744
        %v917 = vpack.c.b16 %v749, %v745
        %v918 = vpack.c.b16 %v750, %v746
        %v919 = vpack.c.b16 %v755, %v751
        %v920 = vpack.c.b16 %v756, %v752
        %v921 = vpack.c.b16 %v757, %v753
        %v922 = vpack.c.b16 %v758, %v754
        %v923 = vpack.c.b16 %v763, %v759
        %v924 = vpack.c.b16 %v764, %v760
        %v925 = vpack.c.b16 %v765, %v761
        %v926 = vpack.c.b16 %v766, %v762
        %v927 = vpack.c.b16 %v771, %v767
        %v928 = vpack.c.b16 %v772, %v768
        %v929 = vpack.c.b16 %v773, %v769
        %v930 = vpack.c.b16 %v774, %v770
        %v931 = vpack.c.b16 %v779, %v775
        %v932 = vpack.c.b16 %v780, %v776
        %v933 = vpack.c.b16 %v781, %v777
        %v934 = vpack.c.b16 %v782, %v778
        %v935 = vpack.c.b16 %v787, %v783
        %v936 = vpack.c.b16 %v788, %v784
        %v937 = vpack.c.b16 %v789, %v785
        %v938 = vpack.c.b16 %v790, %v786
        %v939 = vpack.c.b16 %v795, %v791
        %v940 = vpack.c.b16 %v796, %v792
        %v941 = vpack.c.b16 %v797, %v793
        %v942 = vpack.c.b16 %v798, %v794
        %v943 = vpack.c.b16 %v803, %v799
        %v944 = vpack.c.b16 %v804, %v800
        %v945 = vpack.c.b16 %v805, %v801
        %v946 = vpack.c.b16 %v806, %v802
        %v947 = vpack.c.b16 %v811, %v807
        %v948 = vpack.c.b16 %v812, %v808
        %v949 = vpack.c.b16 %v813, %v809
        %v950 = vpack.c.b16 %v814, %v810
        %v951 = vpack.c.b16 %v819, %v815
        %v952 = vpack.c.b16 %v820, %v816
        %v953 = vpack.c.b16 %v821, %v817
        %v954 = vpack.c.b16 %v822, %v818
        %v955 = vpack.c.b16 %v827, %v823
        %v956 = vpack.c.b16 %v828, %v824
        %v957 = vpack.c.b16 %v829, %v825
        %v958 = vpack.c.b16 %v830, %v826
        %v1151 = vunpack.c.l.b16 %v376
        %v1152 = vunpack.c.l.b16 %v377
        %v1153 = vunpack.c.l.b16 %v378
        %v1154 = vunpack.c.l.b16 %v379
        %v1155 = vunpack.c.l.b16 %v380
        %v1156 = vunpack.c.l.b16 %v381
        %v1157 = vunpack.c.l.b16 %v382
        %v1158 = vunpack.c.l.b16 %v383
        %v1159 = vunpack.c.l.b16 %v384
        %v1160 = vunpack.c.l.b16 %v385
        %v1161 = vunpack.c.l.b16 %v386
        %v1162 = vunpack.c.l.b16 %v387
        %v1163 = vunpack.c.l.b16 %v388
        %v1164 = vunpack.c.l.b16 %v389
        %v1165 = vunpack.c.l.b16 %v390
        %v1166 = vunpack.c.l.b16 %v391
        %v1167 = vunpack.c.l.b16 %v392
        %v1168 = vunpack.c.l.b16 %v393
        %v1169 = vunpack.c.l.b16 %v394
        %v1170 = vunpack.c.l.b16 %v395
        %v1171 = vunpack.c.l.b16 %v396
        %v1172 = vunpack.c.l.b16 %v397
        %v1173 = vunpack.c.l.b16 %v398
        %v1174 = vunpack.c.l.b16 %v399
        %v1175 = vunpack.c.l.b16 %v400
        %v1176 = vunpack.c.l.b16 %v401
        %v1177 = vunpack.c.l.b16 %v402
        %v1178 = vunpack.c.l.b16 %v403
        %v1179 = vunpack.c.l.b16 %v404
        %v1180 = vunpack.c.l.b16 %v405
        %v1181 = vunpack.c.l.b16 %v406
        %v1182 = vunpack.c.l.b16 %v407
        %v1183 = vunpack.c.l.b16 %v408
        %v1184 = vunpack.c.l.b16 %v409
        %v1185 = vunpack.c.l.b16 %v410
        %v1186 = vunpack.c.l.b16 %v411
        %v1187 = vunpack.c.l.b16 %v412
        %v1188 = vunpack.c.l.b16 %v413
        %v1189 = vunpack.c.l.b16 %v414
        %v1190 = vunpack.c.l.b16 %v415
        %v1191 = vunpack.c.l.b16 %v416
        %v1192 = vunpack.c.l.b16 %v417
        %v1193 = vunpack.c.l.b16 %v418
        %v1194 = vunpack.c.l.b16 %v419
        %v1195 = vunpack.c.l.b16 %v420
        %v1196 = vunpack.c.l.b16 %v421
        %v1197 = vunpack.c.l.b16 %v422
        %v1198 = vunpack.c.l.b16 %v423
        %v1199 = vunpack.c.l.b16 %v424
        %v1200 = vunpack.c.l.b16 %v425
        %v1201 = vunpack.c.l.b16 %v426
        %v1202 = vunpack.c.l.b16 %v427
        %v1203 = vunpack.c.l.b16 %v428
        %v1204 = vunpack.c.l.b16 %v429
        %v1205 = vunpack.c.l.b16 %v430
        %v1206 = vunpack.c.l.b16 %v431
        %v1207 = vunpack.c.l.b16 %v432
        %v1208 = vunpack.c.l.b16 %v433
        %v1209 = vunpack.c.l.b16 %v434
        %v1210 = vunpack.c.l.b16 %v435
        %v1211 = vunpack.c.l.b16 %v436
        %v1212 = vunpack.c.l.b16 %v437
        %v1213 = vunpack.c.l.b16 %v438
        %v1214 = vunpack.c.l.b16 %v439
        %v1215 = vpack.c.b16 %v1152, %v1151
        %v1216 = vpack.c.b16 %v1154, %v1153
        %v1217 = vpack.c.b16 %v1156, %v1155
        %v1218 = vpack.c.b16 %v1158, %v1157
        %v1219 = vpack.c.b16 %v1160, %v1159
        %v1220 = vpack.c.b16 %v1162, %v1161
        %v1221 = vpack.c.b16 %v1164, %v1163
        %v1222 = vpack.c.b16 %v1166, %v1165
        %v1223 = vpack.c.b16 %v1168, %v1167
        %v1224 = vpack.c.b16 %v1170, %v1169
        %v1225 = vpack.c.b16 %v1172, %v1171
        %v1226 = vpack.c.b16 %v1174, %v1173
        %v1227 = vpack.c.b16 %v1176, %v1175
        %v1228 = vpack.c.b16 %v1178, %v1177
        %v1229 = vpack.c.b16 %v1180, %v1179
        %v1230 = vpack.c.b16 %v1182, %v1181
        %v1231 = vpack.c.b16 %v1184, %v1183
        %v1232 = vpack.c.b16 %v1186, %v1185
        %v1233 = vpack.c.b16 %v1188, %v1187
        %v1234 = vpack.c.b16 %v1190, %v1189
        %v1235 = vpack.c.b16 %v1192, %v1191
        %v1236 = vpack.c.b16 %v1194, %v1193
        %v1237 = vpack.c.b16 %v1196, %v1195
        %v1238 = vpack.c.b16 %v1198, %v1197
        %v1239 = vpack.c.b16 %v1200, %v1199
        %v1240 = vpack.c.b16 %v1202, %v1201
        %v1241 = vpack.c.b16 %v1204, %v1203
        %v1242 = vpack.c.b16 %v1206, %v1205
        %v1243 = vpack.c.b16 %v1208, %v1207
        %v1244 = vpack.c.b16 %v1210, %v1209
        %v1245 = vpack.c.b16 %v1212, %v1211
        %v1246 = vpack.c.b16 %v1214, %v1213
        %1279 = vmatprep.subr.bf16.mxu0 0
        %1280 = vmatpush1.bf16.msra.mxu0 %v1215
        %1281 = vmatprep.subr.bf16.mxu0 0
        %1282 = vmatpush1.bf16.msra.mxu0 %v1216
        %1283 = vmatprep.subr.bf16.mxu0 0
        %1284 = vmatpush1.bf16.msra.mxu0 %v1217
        %1285 = vmatprep.subr.bf16.mxu0 0
        %1286 = vmatpush1.bf16.msra.mxu0 %v1218
        %1287 = vmatprep.subr.bf16.mxu0 0
        %1288 = vmatpush1.bf16.msra.mxu0 %v1219
        %1289 = vmatprep.subr.bf16.mxu0 0
        %1290 = vmatpush1.bf16.msra.mxu0 %v1220
        %1291 = vmatprep.subr.bf16.mxu0 0
        %1292 = vmatpush1.bf16.msra.mxu0 %v1221
        %1293 = vmatprep.subr.bf16.mxu0 0
        %1294 = vmatpush1.bf16.msra.mxu0 %v1222
        %1295 = vmatprep.subr.bf16.mxu0 0
        %1296 = vmatpush1.bf16.msra.mxu0 %v1223
        %1297 = vmatprep.subr.bf16.mxu0 0
        %1298 = vmatpush1.bf16.msra.mxu0 %v1224
        %1299 = vmatprep.subr.bf16.mxu0 0
        %1300 = vmatpush1.bf16.msra.mxu0 %v1225
        %1301 = vmatprep.subr.bf16.mxu0 0
        %1302 = vmatpush1.bf16.msra.mxu0 %v1226
        %1303 = vmatprep.subr.bf16.mxu0 0
        %1304 = vmatpush1.bf16.msra.mxu0 %v1227
        %1305 = vmatprep.subr.bf16.mxu0 0
        %1306 = vmatpush1.bf16.msra.mxu0 %v1228
        %1307 = vmatprep.subr.bf16.mxu0 0
        %1308 = vmatpush1.bf16.msra.mxu0 %v1229
        %1309 = vmatprep.subr.bf16.mxu0 0
        %1310 = vmatpush1.bf16.msra.mxu0 %v1230
        %1311 = vmatprep.mubr.bf16.mxu0 %v832
        %1312 = vmatmul.mubr.bf16.gmra.mrb[0].mxu0 %v831
        %v1313 = vpop.f32.mrb[0].mxu0
        %v1314 = vadd.f32 %v445, %v1313
        %v1315 = vpop.f32.mrb[0].mxu0
        %v1316 = vpop.f32.mrb[0].mxu0
        %v1317 = vadd.f32 %v445, %v1316
        %v1318 = vpop.f32.mrb[0].mxu0
        %1319 = vmatprep.mubr.bf16.mxu0 %v836
        %1320 = vmatmul.mubr.bf16.gmra.mrb[0].mxu0 %v835
        %v1321 = vpop.f32.mrb[0].mxu0
        %v1322 = vadd.f32 %v445, %v1321
        %v1323 = vpop.f32.mrb[0].mxu0
        %v1324 = vpop.f32.mrb[0].mxu0
        %v1325 = vadd.f32 %v445, %v1324
        %v1326 = vpop.f32.mrb[0].mxu0
        %1327 = vmatprep.mubr.bf16.mxu0 %v840
        %1328 = vmatmul.mubr.bf16.gmra.mrb[0].mxu0 %v839
        %v1329 = vpop.f32.mrb[0].mxu0
        %v1330 = vadd.f32 %v445, %v1329
        %v1331 = vpop.f32.mrb[0].mxu0
        %v1332 = vpop.f32.mrb[0].mxu0
        %v1333 = vadd.f32 %v445, %v1332
        %v1334 = vpop.f32.mrb[0].mxu0
        %1335 = vmatprep.mubr.bf16.mxu0 %v844
        %1336 = vmatmul.mubr.bf16.gmra.mrb[0].mxu0 %v843
        %v1337 = vpop.f32.mrb[0].mxu0
        %v1338 = vadd.f32 %v445, %v1337
        %v1339 = vpop.f32.mrb[0].mxu0
        %v1340 = vpop.f32.mrb[0].mxu0
        %v1341 = vadd.f32 %v445, %v1340
        %v1342 = vpop.f32.mrb[0].mxu0
        %1343 = vmatprep.mubr.bf16.mxu0 %v848
        %1344 = vmatmul.mubr.bf16.gmra.mrb[0].mxu0 %v847
        %v1345 = vpop.f32.mrb[0].mxu0
        %v1346 = vadd.f32 %v445, %v1345
        %v1347 = vpop.f32.mrb[0].mxu0
        %v1348 = vpop.f32.mrb[0].mxu0
        %v1349 = vadd.f32 %v445, %v1348
        %v1350 = vpop.f32.mrb[0].mxu0
        %1351 = vmatprep.mubr.bf16.mxu0 %v852
        %1352 = vmatmul.mubr.bf16.gmra.mrb[0].mxu0 %v851
        %v1353 = vpop.f32.mrb[0].mxu0
        %v1354 = vadd.f32 %v445, %v1353
        %v1355 = vpop.f32.mrb[0].mxu0
        %v1356 = vpop.f32.mrb[0].mxu0
        %v1357 = vadd.f32 %v445, %v1356
        %v1358 = vpop.f32.mrb[0].mxu0
        %1359 = vmatprep.mubr.bf16.mxu0 %v856
        %1360 = vmatmul.mubr.bf16.gmra.mrb[0].mxu0 %v855
        %v1361 = vpop.f32.mrb[0].mxu0
        %v1362 = vadd.f32 %v445, %v1361
        %v1363 = vpop.f32.mrb[0].mxu0
        %v1364 = vpop.f32.mrb[0].mxu0
        %v1365 = vadd.f32 %v445, %v1364
        %v1366 = vpop.f32.mrb[0].mxu0
        %1367 = vmatprep.mubr.bf16.mxu0 %v860
        %1368 = vmatmul.mubr.bf16.gmra.mrb[0].mxu0 %v859
        %v1369 = vpop.f32.mrb[0].mxu0
        %v1370 = vadd.f32 %v445, %v1369
        %v1371 = vpop.f32.mrb[0].mxu0
        %v1372 = vpop.f32.mrb[0].mxu0
        %v1373 = vadd.f32 %v445, %v1372
        %v1374 = vpop.f32.mrb[0].mxu0
        %1375 = vmatprep.mubr.bf16.mxu0 %v864
        %1376 = vmatmul.mubr.bf16.gmra.mrb[0].mxu0 %v863
        %v1377 = vpop.f32.mrb[0].mxu0
        %v1378 = vadd.f32 %v445, %v1377
        %v1379 = vpop.f32.mrb[0].mxu0
        %v1380 = vpop.f32.mrb[0].mxu0
        %v1381 = vadd.f32 %v445, %v1380
        %v1382 = vpop.f32.mrb[0].mxu0
        %1383 = vmatprep.mubr.bf16.mxu0 %v868
        %1384 = vmatmul.mubr.bf16.gmra.mrb[0].mxu0 %v867
        %v1385 = vpop.f32.mrb[0].mxu0
        %v1386 = vadd.f32 %v445, %v1385
        %v1387 = vpop.f32.mrb[0].mxu0
        %v1388 = vpop.f32.mrb[0].mxu0
        %v1389 = vadd.f32 %v445, %v1388
        %v1390 = vpop.f32.mrb[0].mxu0
        %1391 = vmatprep.mubr.bf16.mxu0 %v872
        %1392 = vmatmul.mubr.bf16.gmra.mrb[0].mxu0 %v871
        %v1393 = vpop.f32.mrb[0].mxu0
        %v1394 = vadd.f32 %v445, %v1393
        %v1395 = vpop.f32.mrb[0].mxu0
        %v1396 = vpop.f32.mrb[0].mxu0
        %v1397 = vadd.f32 %v445, %v1396
        %v1398 = vpop.f32.mrb[0].mxu0
        %1399 = vmatprep.mubr.bf16.mxu0 %v876
        %1400 = vmatmul.mubr.bf16.gmra.mrb[0].mxu0 %v875
        %v1401 = vpop.f32.mrb[0].mxu0
        %v1402 = vadd.f32 %v445, %v1401
        %v1403 = vpop.f32.mrb[0].mxu0
        %v1404 = vpop.f32.mrb[0].mxu0
        %v1405 = vadd.f32 %v445, %v1404
        %v1406 = vpop.f32.mrb[0].mxu0
        %1407 = vmatprep.mubr.bf16.mxu0 %v880
        %1408 = vmatmul.mubr.bf16.gmra.mrb[0].mxu0 %v879
        %v1409 = vpop.f32.mrb[0].mxu0
        %v1410 = vadd.f32 %v445, %v1409
        %v1411 = vpop.f32.mrb[0].mxu0
        %v1412 = vpop.f32.mrb[0].mxu0
        %v1413 = vadd.f32 %v445, %v1412
        %v1414 = vpop.f32.mrb[0].mxu0
        %1415 = vmatprep.mubr.bf16.mxu0 %v884
        %1416 = vmatmul.mubr.bf16.gmra.mrb[0].mxu0 %v883
        %v1417 = vpop.f32.mrb[0].mxu0
        %v1418 = vadd.f32 %v445, %v1417
        %v1419 = vpop.f32.mrb[0].mxu0
        %v1420 = vpop.f32.mrb[0].mxu0
        %v1421 = vadd.f32 %v445, %v1420
        %v1422 = vpop.f32.mrb[0].mxu0
        %1423 = vmatprep.mubr.bf16.mxu0 %v888
        %1424 = vmatmul.mubr.bf16.gmra.mrb[0].mxu0 %v887
        %v1425 = vpop.f32.mrb[0].mxu0
        %v1426 = vadd.f32 %v445, %v1425
        %v1427 = vpop.f32.mrb[0].mxu0
        %v1428 = vpop.f32.mrb[0].mxu0
        %v1429 = vadd.f32 %v445, %v1428
        %v1430 = vpop.f32.mrb[0].mxu0
        %1431 = vmatprep.mubr.bf16.mxu0 %v892
        %1432 = vmatmul.mubr.bf16.gmra.mrb[0].mxu0 %v891
        %v1433 = vpop.f32.mrb[0].mxu0
        %v1434 = vadd.f32 %v445, %v1433
        %v1435 = vpop.f32.mrb[0].mxu0
        %v1436 = vpop.f32.mrb[0].mxu0
        %v1437 = vadd.f32 %v445, %v1436
        %v1438 = vpop.f32.mrb[0].mxu0
        %1439 = vmatprep.mubr.bf16.mxu0 %v896
        %1440 = vmatmul.mubr.bf16.gmra.mrb[0].mxu0 %v895
        %v1441 = vpop.f32.mrb[0].mxu0
        %v1442 = vadd.f32 %v445, %v1441
        %v1443 = vpop.f32.mrb[0].mxu0
        %v1444 = vpop.f32.mrb[0].mxu0
        %v1445 = vadd.f32 %v445, %v1444
        %v1446 = vpop.f32.mrb[0].mxu0
        %1447 = vmatprep.mubr.bf16.mxu0 %v900
        %1448 = vmatmul.mubr.bf16.gmra.mrb[0].mxu0 %v899
        %v1449 = vpop.f32.mrb[0].mxu0
        %v1450 = vadd.f32 %v445, %v1449
        %v1451 = vpop.f32.mrb[0].mxu0
        %v1452 = vpop.f32.mrb[0].mxu0
        %v1453 = vadd.f32 %v445, %v1452
        %v1454 = vpop.f32.mrb[0].mxu0
        %1455 = vmatprep.mubr.bf16.mxu0 %v904
        %1456 = vmatmul.mubr.bf16.gmra.mrb[0].mxu0 %v903
        %v1457 = vpop.f32.mrb[0].mxu0
        %v1458 = vadd.f32 %v445, %v1457
        %v1459 = vpop.f32.mrb[0].mxu0
        %v1460 = vpop.f32.mrb[0].mxu0
        %v1461 = vadd.f32 %v445, %v1460
        %v1462 = vpop.f32.mrb[0].mxu0
        %1463 = vmatprep.mubr.bf16.mxu0 %v908
        %1464 = vmatmul.mubr.bf16.gmra.mrb[0].mxu0 %v907
        %v1465 = vpop.f32.mrb[0].mxu0
        %v1466 = vadd.f32 %v445, %v1465
        %v1467 = vpop.f32.mrb[0].mxu0
        %v1468 = vpop.f32.mrb[0].mxu0
        %v1469 = vadd.f32 %v445, %v1468
        %v1470 = vpop.f32.mrb[0].mxu0
        %1471 = vmatprep.mubr.bf16.mxu0 %v912
        %1472 = vmatmul.mubr.bf16.gmra.mrb[0].mxu0 %v911
        %v1473 = vpop.f32.mrb[0].mxu0
        %v1474 = vadd.f32 %v445, %v1473
        %v1475 = vpop.f32.mrb[0].mxu0
        %v1476 = vpop.f32.mrb[0].mxu0
        %v1477 = vadd.f32 %v445, %v1476
        %v1478 = vpop.f32.mrb[0].mxu0
        %1479 = vmatprep.mubr.bf16.mxu0 %v916
        %1480 = vmatmul.mubr.bf16.gmra.mrb[0].mxu0 %v915
        %v1481 = vpop.f32.mrb[0].mxu0
        %v1482 = vadd.f32 %v445, %v1481
        %v1483 = vpop.f32.mrb[0].mxu0
        %v1484 = vpop.f32.mrb[0].mxu0
        %v1485 = vadd.f32 %v445, %v1484
        %v1486 = vpop.f32.mrb[0].mxu0
        %1487 = vmatprep.mubr.bf16.mxu0 %v920
        %1488 = vmatmul.mubr.bf16.gmra.mrb[0].mxu0 %v919
        %v1489 = vpop.f32.mrb[0].mxu0
        %v1490 = vadd.f32 %v445, %v1489
        %v1491 = vpop.f32.mrb[0].mxu0
        %v1492 = vpop.f32.mrb[0].mxu0
        %v1493 = vadd.f32 %v445, %v1492
        %v1494 = vpop.f32.mrb[0].mxu0
        %1495 = vmatprep.mubr.bf16.mxu0 %v924
        %1496 = vmatmul.mubr.bf16.gmra.mrb[0].mxu0 %v923
        %v1497 = vpop.f32.mrb[0].mxu0
        %v1498 = vadd.f32 %v445, %v1497
        %v1499 = vpop.f32.mrb[0].mxu0
        %v1500 = vpop.f32.mrb[0].mxu0
        %v1501 = vadd.f32 %v445, %v1500
        %v1502 = vpop.f32.mrb[0].mxu0
        %1503 = vmatprep.mubr.bf16.mxu0 %v928
        %1504 = vmatmul.mubr.bf16.gmra.mrb[0].mxu0 %v927
        %v1505 = vpop.f32.mrb[0].mxu0
        %v1506 = vadd.f32 %v445, %v1505
        %v1507 = vpop.f32.mrb[0].mxu0
        %v1508 = vpop.f32.mrb[0].mxu0
        %v1509 = vadd.f32 %v445, %v1508
        %v1510 = vpop.f32.mrb[0].mxu0
        %1511 = vmatprep.mubr.bf16.mxu0 %v932
        %1512 = vmatmul.mubr.bf16.gmra.mrb[0].mxu0 %v931
        %v1513 = vpop.f32.mrb[0].mxu0
        %v1514 = vadd.f32 %v445, %v1513
        %v1515 = vpop.f32.mrb[0].mxu0
        %v1516 = vpop.f32.mrb[0].mxu0
        %v1517 = vadd.f32 %v445, %v1516
        %v1518 = vpop.f32.mrb[0].mxu0
        %1519 = vmatprep.mubr.bf16.mxu0 %v936
        %1520 = vmatmul.mubr.bf16.gmra.mrb[0].mxu0 %v935
        %v1521 = vpop.f32.mrb[0].mxu0
        %v1522 = vadd.f32 %v445, %v1521
        %v1523 = vpop.f32.mrb[0].mxu0
        %v1524 = vpop.f32.mrb[0].mxu0
        %v1525 = vadd.f32 %v445, %v1524
        %v1526 = vpop.f32.mrb[0].mxu0
        %1527 = vmatprep.mubr.bf16.mxu0 %v940
        %1528 = vmatmul.mubr.bf16.gmra.mrb[0].mxu0 %v939
        %v1529 = vpop.f32.mrb[0].mxu0
        %v1530 = vadd.f32 %v445, %v1529
        %v1531 = vpop.f32.mrb[0].mxu0
        %v1532 = vpop.f32.mrb[0].mxu0
        %v1533 = vadd.f32 %v445, %v1532
        %v1534 = vpop.f32.mrb[0].mxu0
        %1535 = vmatprep.mubr.bf16.mxu0 %v944
        %1536 = vmatmul.mubr.bf16.gmra.mrb[0].mxu0 %v943
        %v1537 = vpop.f32.mrb[0].mxu0
        %v1538 = vadd.f32 %v445, %v1537
        %v1539 = vpop.f32.mrb[0].mxu0
        %v1540 = vpop.f32.mrb[0].mxu0
        %v1541 = vadd.f32 %v445, %v1540
        %v1542 = vpop.f32.mrb[0].mxu0
        %1543 = vmatprep.mubr.bf16.mxu0 %v948
        %1544 = vmatmul.mubr.bf16.gmra.mrb[0].mxu0 %v947
        %v1545 = vpop.f32.mrb[0].mxu0
        %v1546 = vadd.f32 %v445, %v1545
        %v1547 = vpop.f32.mrb[0].mxu0
        %v1548 = vpop.f32.mrb[0].mxu0
        %v1549 = vadd.f32 %v445, %v1548
        %v1550 = vpop.f32.mrb[0].mxu0
        %1551 = vmatprep.mubr.bf16.mxu0 %v952
        %1552 = vmatmul.mubr.bf16.gmra.mrb[0].mxu0 %v951
        %v1553 = vpop.f32.mrb[0].mxu0
        %v1554 = vadd.f32 %v445, %v1553
        %v1555 = vpop.f32.mrb[0].mxu0
        %v1556 = vpop.f32.mrb[0].mxu0
        %v1557 = vadd.f32 %v445, %v1556
        %v1558 = vpop.f32.mrb[0].mxu0
        %1559 = vmatprep.mubr.bf16.mxu0 %v956
        %1560 = vmatmul.mubr.bf16.gmra.mrb[0].mxu0 %v955
        %v1561 = vpop.f32.mrb[0].mxu0
        %v1562 = vadd.f32 %v445, %v1561
        %v1563 = vpop.f32.mrb[0].mxu0
        %v1564 = vpop.f32.mrb[0].mxu0
        %v1565 = vadd.f32 %v445, %v1564
        %v1566 = vpop.f32.mrb[0].mxu0
        %1567 = vdwg.mxu0
        %1568 = vmatprep.subr.bf16.mxu0 0
        %1569 = vmatpush1.bf16.msra.mxu0 %v1231
        %1570 = vmatprep.subr.bf16.mxu0 0
        %1571 = vmatpush1.bf16.msra.mxu0 %v1232
        %1572 = vmatprep.subr.bf16.mxu0 0
        %1573 = vmatpush1.bf16.msra.mxu0 %v1233
        %1574 = vmatprep.subr.bf16.mxu0 0
        %1575 = vmatpush1.bf16.msra.mxu0 %v1234
        %1576 = vmatprep.subr.bf16.mxu0 0
        %1577 = vmatpush1.bf16.msra.mxu0 %v1235
        %1578 = vmatprep.subr.bf16.mxu0 0
        %1579 = vmatpush1.bf16.msra.mxu0 %v1236
        %1580 = vmatprep.subr.bf16.mxu0 0
        %1581 = vmatpush1.bf16.msra.mxu0 %v1237
        %1582 = vmatprep.subr.bf16.mxu0 0
        %1583 = vmatpush1.bf16.msra.mxu0 %v1238
        %1584 = vmatprep.subr.bf16.mxu0 0
        %1585 = vmatpush1.bf16.msra.mxu0 %v1239
        %1586 = vmatprep.subr.bf16.mxu0 0
        %1587 = vmatpush1.bf16.msra.mxu0 %v1240
        %1588 = vmatprep.subr.bf16.mxu0 0
        %1589 = vmatpush1.bf16.msra.mxu0 %v1241
        %1590 = vmatprep.subr.bf16.mxu0 0
        %1591 = vmatpush1.bf16.msra.mxu0 %v1242
        %1592 = vmatprep.subr.bf16.mxu0 0
        %1593 = vmatpush1.bf16.msra.mxu0 %v1243
        %1594 = vmatprep.subr.bf16.mxu0 0
        %1595 = vmatpush1.bf16.msra.mxu0 %v1244
        %1596 = vmatprep.subr.bf16.mxu0 0
        %1597 = vmatpush1.bf16.msra.mxu0 %v1245
        %1598 = vmatprep.subr.bf16.mxu0 0
        %1599 = vmatpush1.bf16.msra.mxu0 %v1246
        %1600 = vmatprep.mubr.bf16.mxu0 %v834
        %1601 = vmatmul.mubr.bf16.gmra.mrb[0].mxu0 %v833
        %v1602 = vpop.f32.mrb[0].mxu0
        %v1603 = vadd.f32 %v1314, %v1602
        %v1604 = vpop.f32.mrb[0].mxu0
        %v1605 = vpop.f32.mrb[0].mxu0
        %v1606 = vadd.f32 %v1317, %v1605
        %v1607 = vpop.f32.mrb[0].mxu0
        %1608 = vmatprep.mubr.bf16.mxu0 %v838
        %1609 = vmatmul.mubr.bf16.gmra.mrb[0].mxu0 %v837
        %v1610 = vpop.f32.mrb[0].mxu0
        %v1611 = vadd.f32 %v1322, %v1610
        %v1612 = vpop.f32.mrb[0].mxu0
        %v1613 = vpop.f32.mrb[0].mxu0
        %v1614 = vadd.f32 %v1325, %v1613
        %v1615 = vpop.f32.mrb[0].mxu0
        %1616 = vmatprep.mubr.bf16.mxu0 %v842
        %1617 = vmatmul.mubr.bf16.gmra.mrb[0].mxu0 %v841
        %v1618 = vpop.f32.mrb[0].mxu0
        %v1619 = vadd.f32 %v1330, %v1618
        %v1620 = vpop.f32.mrb[0].mxu0
        %v1621 = vpop.f32.mrb[0].mxu0
        %v1622 = vadd.f32 %v1333, %v1621
        %v1623 = vpop.f32.mrb[0].mxu0
        %1624 = vmatprep.mubr.bf16.mxu0 %v846
        %1625 = vmatmul.mubr.bf16.gmra.mrb[0].mxu0 %v845
        %v1626 = vpop.f32.mrb[0].mxu0
        %v1627 = vadd.f32 %v1338, %v1626
        %v1628 = vpop.f32.mrb[0].mxu0
        %v1629 = vpop.f32.mrb[0].mxu0
        %v1630 = vadd.f32 %v1341, %v1629
        %v1631 = vpop.f32.mrb[0].mxu0
        %1632 = vmatprep.mubr.bf16.mxu0 %v850
        %1633 = vmatmul.mubr.bf16.gmra.mrb[0].mxu0 %v849
        %v1634 = vpop.f32.mrb[0].mxu0
        %v1635 = vadd.f32 %v1346, %v1634
        %v1636 = vpop.f32.mrb[0].mxu0
        %v1637 = vpop.f32.mrb[0].mxu0
        %v1638 = vadd.f32 %v1349, %v1637
        %v1639 = vpop.f32.mrb[0].mxu0
        %1640 = vmatprep.mubr.bf16.mxu0 %v854
        %1641 = vmatmul.mubr.bf16.gmra.mrb[0].mxu0 %v853
        %v1642 = vpop.f32.mrb[0].mxu0
        %v1643 = vadd.f32 %v1354, %v1642
        %v1644 = vpop.f32.mrb[0].mxu0
        %v1645 = vpop.f32.mrb[0].mxu0
        %v1646 = vadd.f32 %v1357, %v1645
        %v1647 = vpop.f32.mrb[0].mxu0
        %1648 = vmatprep.mubr.bf16.mxu0 %v858
        %1649 = vmatmul.mubr.bf16.gmra.mrb[0].mxu0 %v857
        %v1650 = vpop.f32.mrb[0].mxu0
        %v1651 = vadd.f32 %v1362, %v1650
        %v1652 = vpop.f32.mrb[0].mxu0
        %v1653 = vpop.f32.mrb[0].mxu0
        %v1654 = vadd.f32 %v1365, %v1653
        %v1655 = vpop.f32.mrb[0].mxu0
        %1656 = vmatprep.mubr.bf16.mxu0 %v862
        %1657 = vmatmul.mubr.bf16.gmra.mrb[0].mxu0 %v861
        %v1658 = vpop.f32.mrb[0].mxu0
        %v1659 = vadd.f32 %v1370, %v1658
        %v1660 = vpop.f32.mrb[0].mxu0
        %v1661 = vpop.f32.mrb[0].mxu0
        %v1662 = vadd.f32 %v1373, %v1661
        %v1663 = vpop.f32.mrb[0].mxu0
        %1664 = vmatprep.mubr.bf16.mxu0 %v866
        %1665 = vmatmul.mubr.bf16.gmra.mrb[0].mxu0 %v865
        %v1666 = vpop.f32.mrb[0].mxu0
        %v1667 = vadd.f32 %v1378, %v1666
        %v1668 = vpop.f32.mrb[0].mxu0
        %v1669 = vpop.f32.mrb[0].mxu0
        %v1670 = vadd.f32 %v1381, %v1669
        %v1671 = vpop.f32.mrb[0].mxu0
        %1672 = vmatprep.mubr.bf16.mxu0 %v870
        %1673 = vmatmul.mubr.bf16.gmra.mrb[0].mxu0 %v869
        %v1674 = vpop.f32.mrb[0].mxu0
        %v1675 = vadd.f32 %v1386, %v1674
        %v1676 = vpop.f32.mrb[0].mxu0
        %v1677 = vpop.f32.mrb[0].mxu0
        %v1678 = vadd.f32 %v1389, %v1677
        %v1679 = vpop.f32.mrb[0].mxu0
        %1680 = vmatprep.mubr.bf16.mxu0 %v874
        %1681 = vmatmul.mubr.bf16.gmra.mrb[0].mxu0 %v873
        %v1682 = vpop.f32.mrb[0].mxu0
        %v1683 = vadd.f32 %v1394, %v1682
        %v1684 = vpop.f32.mrb[0].mxu0
        %v1685 = vpop.f32.mrb[0].mxu0
        %v1686 = vadd.f32 %v1397, %v1685
        %v1687 = vpop.f32.mrb[0].mxu0
        %1688 = vmatprep.mubr.bf16.mxu0 %v878
        %1689 = vmatmul.mubr.bf16.gmra.mrb[0].mxu0 %v877
        %v1690 = vpop.f32.mrb[0].mxu0
        %v1691 = vadd.f32 %v1402, %v1690
        %v1692 = vpop.f32.mrb[0].mxu0
        %v1693 = vpop.f32.mrb[0].mxu0
        %v1694 = vadd.f32 %v1405, %v1693
        %v1695 = vpop.f32.mrb[0].mxu0
        %1696 = vmatprep.mubr.bf16.mxu0 %v882
        %1697 = vmatmul.mubr.bf16.gmra.mrb[0].mxu0 %v881
        %v1698 = vpop.f32.mrb[0].mxu0
        %v1699 = vadd.f32 %v1410, %v1698
        %v1700 = vpop.f32.mrb[0].mxu0
        %v1701 = vpop.f32.mrb[0].mxu0
        %v1702 = vadd.f32 %v1413, %v1701
        %v1703 = vpop.f32.mrb[0].mxu0
        %1704 = vmatprep.mubr.bf16.mxu0 %v886
        %1705 = vmatmul.mubr.bf16.gmra.mrb[0].mxu0 %v885
        %v1706 = vpop.f32.mrb[0].mxu0
        %v1707 = vadd.f32 %v1418, %v1706
        %v1708 = vpop.f32.mrb[0].mxu0
        %v1709 = vpop.f32.mrb[0].mxu0
        %v1710 = vadd.f32 %v1421, %v1709
        %v1711 = vpop.f32.mrb[0].mxu0
        %1712 = vmatprep.mubr.bf16.mxu0 %v890
        %1713 = vmatmul.mubr.bf16.gmra.mrb[0].mxu0 %v889
        %v1714 = vpop.f32.mrb[0].mxu0
        %v1715 = vadd.f32 %v1426, %v1714
        %v1716 = vpop.f32.mrb[0].mxu0
        %v1717 = vpop.f32.mrb[0].mxu0
        %v1718 = vadd.f32 %v1429, %v1717
        %v1719 = vpop.f32.mrb[0].mxu0
        %1720 = vmatprep.mubr.bf16.mxu0 %v894
        %1721 = vmatmul.mubr.bf16.gmra.mrb[0].mxu0 %v893
        %v1722 = vpop.f32.mrb[0].mxu0
        %v1723 = vadd.f32 %v1434, %v1722
        %v1724 = vpop.f32.mrb[0].mxu0
        %v1725 = vpop.f32.mrb[0].mxu0
        %v1726 = vadd.f32 %v1437, %v1725
        %v1727 = vpop.f32.mrb[0].mxu0
        %1728 = vmatprep.mubr.bf16.mxu0 %v898
        %1729 = vmatmul.mubr.bf16.gmra.mrb[0].mxu0 %v897
        %v1730 = vpop.f32.mrb[0].mxu0
        %v1731 = vadd.f32 %v1442, %v1730
        %v1732 = vpop.f32.mrb[0].mxu0
        %v1733 = vpop.f32.mrb[0].mxu0
        %v1734 = vadd.f32 %v1445, %v1733
        %v1735 = vpop.f32.mrb[0].mxu0
        %1736 = vmatprep.mubr.bf16.mxu0 %v902
        %1737 = vmatmul.mubr.bf16.gmra.mrb[0].mxu0 %v901
        %v1738 = vpop.f32.mrb[0].mxu0
        %v1739 = vadd.f32 %v1450, %v1738
        %v1740 = vpop.f32.mrb[0].mxu0
        %v1741 = vpop.f32.mrb[0].mxu0
        %v1742 = vadd.f32 %v1453, %v1741
        %v1743 = vpop.f32.mrb[0].mxu0
        %1744 = vmatprep.mubr.bf16.mxu0 %v906
        %1745 = vmatmul.mubr.bf16.gmra.mrb[0].mxu0 %v905
        %v1746 = vpop.f32.mrb[0].mxu0
        %v1747 = vadd.f32 %v1458, %v1746
        %v1748 = vpop.f32.mrb[0].mxu0
        %v1749 = vpop.f32.mrb[0].mxu0
        %v1750 = vadd.f32 %v1461, %v1749
        %v1751 = vpop.f32.mrb[0].mxu0
        %1752 = vmatprep.mubr.bf16.mxu0 %v910
        %1753 = vmatmul.mubr.bf16.gmra.mrb[0].mxu0 %v909
        %v1754 = vpop.f32.mrb[0].mxu0
        %v1755 = vadd.f32 %v1466, %v1754
        %v1756 = vpop.f32.mrb[0].mxu0
        %v1757 = vpop.f32.mrb[0].mxu0
        %v1758 = vadd.f32 %v1469, %v1757
        %v1759 = vpop.f32.mrb[0].mxu0
        %1760 = vmatprep.mubr.bf16.mxu0 %v914
        %1761 = vmatmul.mubr.bf16.gmra.mrb[0].mxu0 %v913
        %v1762 = vpop.f32.mrb[0].mxu0
        %v1763 = vadd.f32 %v1474, %v1762
        %v1764 = vpop.f32.mrb[0].mxu0
        %v1765 = vpop.f32.mrb[0].mxu0
        %v1766 = vadd.f32 %v1477, %v1765
        %v1767 = vpop.f32.mrb[0].mxu0
        %1768 = vmatprep.mubr.bf16.mxu0 %v918
        %1769 = vmatmul.mubr.bf16.gmra.mrb[0].mxu0 %v917
        %v1770 = vpop.f32.mrb[0].mxu0
        %v1771 = vadd.f32 %v1482, %v1770
        %v1772 = vpop.f32.mrb[0].mxu0
        %v1773 = vpop.f32.mrb[0].mxu0
        %v1774 = vadd.f32 %v1485, %v1773
        %v1775 = vpop.f32.mrb[0].mxu0
        %1776 = vmatprep.mubr.bf16.mxu0 %v922
        %1777 = vmatmul.mubr.bf16.gmra.mrb[0].mxu0 %v921
        %v1778 = vpop.f32.mrb[0].mxu0
        %v1779 = vadd.f32 %v1490, %v1778
        %v1780 = vpop.f32.mrb[0].mxu0
        %v1781 = vpop.f32.mrb[0].mxu0
        %v1782 = vadd.f32 %v1493, %v1781
        %v1783 = vpop.f32.mrb[0].mxu0
        %1784 = vmatprep.mubr.bf16.mxu0 %v926
        %1785 = vmatmul.mubr.bf16.gmra.mrb[0].mxu0 %v925
        %v1786 = vpop.f32.mrb[0].mxu0
        %v1787 = vadd.f32 %v1498, %v1786
        %v1788 = vpop.f32.mrb[0].mxu0
        %v1789 = vpop.f32.mrb[0].mxu0
        %v1790 = vadd.f32 %v1501, %v1789
        %v1791 = vpop.f32.mrb[0].mxu0
        %1792 = vmatprep.mubr.bf16.mxu0 %v930
        %1793 = vmatmul.mubr.bf16.gmra.mrb[0].mxu0 %v929
        %v1794 = vpop.f32.mrb[0].mxu0
        %v1795 = vadd.f32 %v1506, %v1794
        %v1796 = vpop.f32.mrb[0].mxu0
        %v1797 = vpop.f32.mrb[0].mxu0
        %v1798 = vadd.f32 %v1509, %v1797
        %v1799 = vpop.f32.mrb[0].mxu0
        %1800 = vmatprep.mubr.bf16.mxu0 %v934
        %1801 = vmatmul.mubr.bf16.gmra.mrb[0].mxu0 %v933
        %v1802 = vpop.f32.mrb[0].mxu0
        %v1803 = vadd.f32 %v1514, %v1802
        %v1804 = vpop.f32.mrb[0].mxu0
        %v1805 = vpop.f32.mrb[0].mxu0
        %v1806 = vadd.f32 %v1517, %v1805
        %v1807 = vpop.f32.mrb[0].mxu0
        %1808 = vmatprep.mubr.bf16.mxu0 %v938
        %1809 = vmatmul.mubr.bf16.gmra.mrb[0].mxu0 %v937
        %v1810 = vpop.f32.mrb[0].mxu0
        %v1811 = vadd.f32 %v1522, %v1810
        %v1812 = vpop.f32.mrb[0].mxu0
        %v1813 = vpop.f32.mrb[0].mxu0
        %v1814 = vadd.f32 %v1525, %v1813
        %v1815 = vpop.f32.mrb[0].mxu0
        %1816 = vmatprep.mubr.bf16.mxu0 %v942
        %1817 = vmatmul.mubr.bf16.gmra.mrb[0].mxu0 %v941
        %v1818 = vpop.f32.mrb[0].mxu0
        %v1819 = vadd.f32 %v1530, %v1818
        %v1820 = vpop.f32.mrb[0].mxu0
        %v1821 = vpop.f32.mrb[0].mxu0
        %v1822 = vadd.f32 %v1533, %v1821
        %v1823 = vpop.f32.mrb[0].mxu0
        %1824 = vmatprep.mubr.bf16.mxu0 %v946
        %1825 = vmatmul.mubr.bf16.gmra.mrb[0].mxu0 %v945
        %v1826 = vpop.f32.mrb[0].mxu0
        %v1827 = vadd.f32 %v1538, %v1826
        %v1828 = vpop.f32.mrb[0].mxu0
        %v1829 = vpop.f32.mrb[0].mxu0
        %v1830 = vadd.f32 %v1541, %v1829
        %v1831 = vpop.f32.mrb[0].mxu0
        %1832 = vmatprep.mubr.bf16.mxu0 %v950
        %1833 = vmatmul.mubr.bf16.gmra.mrb[0].mxu0 %v949
        %v1834 = vpop.f32.mrb[0].mxu0
        %v1835 = vadd.f32 %v1546, %v1834
        %v1836 = vpop.f32.mrb[0].mxu0
        %v1837 = vpop.f32.mrb[0].mxu0
        %v1838 = vadd.f32 %v1549, %v1837
        %v1839 = vpop.f32.mrb[0].mxu0
        %1840 = vmatprep.mubr.bf16.mxu0 %v954
        %1841 = vmatmul.mubr.bf16.gmra.mrb[0].mxu0 %v953
        %v1842 = vpop.f32.mrb[0].mxu0
        %v1843 = vadd.f32 %v1554, %v1842
        %v1844 = vpop.f32.mrb[0].mxu0
        %v1845 = vpop.f32.mrb[0].mxu0
        %v1846 = vadd.f32 %v1557, %v1845
        %v1847 = vpop.f32.mrb[0].mxu0
        %1848 = vmatprep.mubr.bf16.mxu0 %v958
        %1849 = vmatmul.mubr.bf16.gmra.mrb[0].mxu0 %v957
        %v1850 = vpop.f32.mrb[0].mxu0
        %v1851 = vadd.f32 %v1562, %v1850
        %v1852 = vpop.f32.mrb[0].mxu0
        %v1853 = vpop.f32.mrb[0].mxu0
        %v1854 = vadd.f32 %v1565, %v1853
        %v1855 = vpop.f32.mrb[0].mxu0
        %1856 = vdwg.mxu0
        %v1857 = vmax.f32 %v1603, 0.0
        %v1858 = vmax.f32 %v1606, 0.0
        %v1859 = vmax.f32 %v1611, 0.0
        %v1860 = vmax.f32 %v1614, 0.0
        %v1861 = vmax.f32 %v1619, 0.0
        %v1862 = vmax.f32 %v1622, 0.0
        %v1863 = vmax.f32 %v1627, 0.0
        %v1864 = vmax.f32 %v1630, 0.0
        %v1865 = vmax.f32 %v1635, 0.0
        %v1866 = vmax.f32 %v1638, 0.0
        %v1867 = vmax.f32 %v1643, 0.0
        %v1868 = vmax.f32 %v1646, 0.0
        %v1869 = vmax.f32 %v1651, 0.0
        %v1870 = vmax.f32 %v1654, 0.0
        %v1871 = vmax.f32 %v1659, 0.0
        %v1872 = vmax.f32 %v1662, 0.0
        %v1873 = vmax.f32 %v1667, 0.0
        %v1874 = vmax.f32 %v1670, 0.0
        %v1875 = vmax.f32 %v1675, 0.0
        %v1876 = vmax.f32 %v1678, 0.0
        %v1877 = vmax.f32 %v1683, 0.0
        %v1878 = vmax.f32 %v1686, 0.0
        %v1879 = vmax.f32 %v1691, 0.0
        %v1880 = vmax.f32 %v1694, 0.0
        %v1881 = vmax.f32 %v1699, 0.0
        %v1882 = vmax.f32 %v1702, 0.0
        %v1883 = vmax.f32 %v1707, 0.0
        %v1884 = vmax.f32 %v1710, 0.0
        %v1885 = vmax.f32 %v1715, 0.0
        %v1886 = vmax.f32 %v1718, 0.0
        %v1887 = vmax.f32 %v1723, 0.0
        %v1888 = vmax.f32 %v1726, 0.0
        %v1889 = vmax.f32 %v1731, 0.0
        %v1890 = vmax.f32 %v1734, 0.0
        %v1891 = vmax.f32 %v1739, 0.0
        %v1892 = vmax.f32 %v1742, 0.0
        %v1893 = vmax.f32 %v1747, 0.0
        %v1894 = vmax.f32 %v1750, 0.0
        %v1895 = vmax.f32 %v1755, 0.0
        %v1896 = vmax.f32 %v1758, 0.0
        %v1897 = vmax.f32 %v1763, 0.0
        %v1898 = vmax.f32 %v1766, 0.0
        %v1899 = vmax.f32 %v1771, 0.0
        %v1900 = vmax.f32 %v1774, 0.0
        %v1901 = vmax.f32 %v1779, 0.0
        %v1902 = vmax.f32 %v1782, 0.0
        %v1903 = vmax.f32 %v1787, 0.0
        %v1904 = vmax.f32 %v1790, 0.0
        %v1905 = vmax.f32 %v1795, 0.0
        %v1906 = vmax.f32 %v1798, 0.0
        %v1907 = vmax.f32 %v1803, 0.0
        %v1908 = vmax.f32 %v1806, 0.0
        %v1909 = vmax.f32 %v1811, 0.0
        %v1910 = vmax.f32 %v1814, 0.0
        %v1911 = vmax.f32 %v1819, 0.0
        %v1912 = vmax.f32 %v1822, 0.0
        %v1913 = vmax.f32 %v1827, 0.0
        %v1914 = vmax.f32 %v1830, 0.0
        %v1915 = vmax.f32 %v1835, 0.0
        %v1916 = vmax.f32 %v1838, 0.0
        %v1917 = vmax.f32 %v1843, 0.0
        %v1918 = vmax.f32 %v1846, 0.0
        %v1919 = vmax.f32 %v1851, 0.0
        %v1920 = vmax.f32 %v1854, 0.0
        %v1921 = vld [vmem:[%s3] sm:$0x1]
        %v1922 = vld [vmem:[#allocation2] sm:$0x1]
        %1924 = vset.pattern.permute.xlu0 0
        %1925 = vperm.xlu0 %1924, %v1922
        %v1926 = vpop.permute.xlu0 %1925
        %v1928 = vlaneseq
        %v1929 = vshrl.u32 %v1928, 7
        %v1930 = vsub.s32 0, %v1929
        %v1931 = vrot.slane %v1926, %v1930
        %vm1932 = vcmask 523264
        %v1934 = vsel %vm1932, %v1921, 0
        %v1937 = vsel %vm1932, %v1857, 0
        %v1940 = vsel %vm1932, %v1858, 0
        %v1943 = vsel %vm1932, %v1859, 0
        %v1946 = vsel %vm1932, %v1860, 0
        %v1949 = vsel %vm1932, %v1861, 0
        %v1952 = vsel %vm1932, %v1862, 0
        %v1955 = vsel %vm1932, %v1863, 0
        %v1958 = vsel %vm1932, %v1864, 0
        %v1961 = vsel %vm1932, %v1865, 0
        %v1964 = vsel %vm1932, %v1866, 0
        %v1967 = vsel %vm1932, %v1867, 0
        %v1970 = vsel %vm1932, %v1868, 0
        %v1973 = vsel %vm1932, %v1869, 0
        %v1976 = vsel %vm1932, %v1870, 0
        %v1979 = vsel %vm1932, %v1871, 0
        %v1982 = vsel %vm1932, %v1872, 0
        %v1985 = vsel %vm1932, %v1873, 0
        %v1988 = vsel %vm1932, %v1874, 0
        %v1991 = vsel %vm1932, %v1875, 0
        %v1994 = vsel %vm1932, %v1876, 0
        %v1997 = vsel %vm1932, %v1877, 0
        %v2000 = vsel %vm1932, %v1878, 0
        %v2003 = vsel %vm1932, %v1879, 0
        %v2006 = vsel %vm1932, %v1880, 0
        %v2009 = vsel %vm1932, %v1881, 0
        %v2012 = vsel %vm1932, %v1882, 0
        %v2015 = vsel %vm1932, %v1883, 0
        %v2018 = vsel %vm1932, %v1884, 0
        %v2021 = vsel %vm1932, %v1885, 0
        %v2024 = vsel %vm1932, %v1886, 0
        %v2027 = vsel %vm1932, %v1887, 0
        %v2030 = vsel %vm1932, %v1888, 0
        %v2033 = vsel %vm1932, %v1889, 0
        %v2036 = vsel %vm1932, %v1890, 0
        %v2039 = vsel %vm1932, %v1891, 0
        %v2042 = vsel %vm1932, %v1892, 0
        %v2045 = vsel %vm1932, %v1893, 0
        %v2048 = vsel %vm1932, %v1894, 0
        %v2051 = vsel %vm1932, %v1895, 0
        %v2054 = vsel %vm1932, %v1896, 0
        %v2057 = vsel %vm1932, %v1897, 0
        %v2060 = vsel %vm1932, %v1898, 0
        %v2063 = vsel %vm1932, %v1899, 0
        %v2066 = vsel %vm1932, %v1900, 0
        %v2069 = vsel %vm1932, %v1901, 0
        %v2072 = vsel %vm1932, %v1902, 0
        %v2075 = vsel %vm1932, %v1903, 0
        %v2078 = vsel %vm1932, %v1904, 0
        %v2081 = vsel %vm1932, %v1905, 0
        %v2084 = vsel %vm1932, %v1906, 0
        %v2087 = vsel %vm1932, %v1907, 0
        %v2090 = vsel %vm1932, %v1908, 0
        %v2093 = vsel %vm1932, %v1909, 0
        %v2096 = vsel %vm1932, %v1910, 0
        %v2099 = vsel %vm1932, %v1911, 0
        %v2102 = vsel %vm1932, %v1912, 0
        %v2105 = vsel %vm1932, %v1913, 0
        %v2108 = vsel %vm1932, %v1914, 0
        %v2111 = vsel %vm1932, %v1915, 0
        %v2114 = vsel %vm1932, %v1916, 0
        %v2117 = vsel %vm1932, %v1917, 0
        %v2120 = vsel %vm1932, %v1918, 0
        %v2123 = vsel %vm1932, %v1919, 0
        %v2126 = vsel %vm1932, %v1920, 0
        %2128 = vmatprep.subr.mxu0 0.0
        %2129 = vmatpush1.xpose.msra.mxu0 %v1937
        %2130 = vmatprep.subr.mxu0 0.0
        %2131 = vmatpush1.xpose.msra.mxu0 %v1940
        %2132 = vmatprep.subr.mxu0 0.0
        %2133 = vmatpush1.xpose.msra.mxu0 %v1943
        %2134 = vmatprep.subr.mxu0 0.0
        %2135 = vmatpush1.xpose.msra.mxu0 %v1946
        %2136 = vmatprep.subr.mxu0 0.0
        %2137 = vmatpush1.xpose.msra.mxu0 %v1949
        %2138 = vmatprep.subr.mxu0 0.0
        %2139 = vmatpush1.xpose.msra.mxu0 %v1952
        %2140 = vmatprep.subr.mxu0 0.0
        %2141 = vmatpush1.xpose.msra.mxu0 %v1955
        %2142 = vmatprep.subr.mxu0 0.0
        %2143 = vmatpush1.xpose.msra.mxu0 %v1958
        %2144 = vmatprep.subr.mxu0 0.0
        %2145 = vmatpush1.xpose.msra.mxu0 %v1961
        %2146 = vmatprep.subr.mxu0 0.0
        %2147 = vmatpush1.xpose.msra.mxu0 %v1964
        %2148 = vmatprep.subr.mxu0 0.0
        %2149 = vmatpush1.xpose.msra.mxu0 %v1967
        %2150 = vmatprep.subr.mxu0 0.0
        %2151 = vmatpush1.xpose.msra.mxu0 %v1970
        %2152 = vmatprep.subr.mxu0 0.0
        %2153 = vmatpush1.xpose.msra.mxu0 %v1973
        %2154 = vmatprep.subr.mxu0 0.0
        %2155 = vmatpush1.xpose.msra.mxu0 %v1976
        %2156 = vmatprep.subr.mxu0 0.0
        %2157 = vmatpush1.xpose.msra.mxu0 %v1979
        %2158 = vmatprep.subr.mxu0 0.0
        %2159 = vmatpush1.xpose.msra.mxu0 %v1982
        %2160 = vmatprep.subr.mxu0 0.0
        %2161 = vmatpush1.xpose.msra.mxu0 %v1985
        %2162 = vmatprep.subr.mxu0 0.0
        %2163 = vmatpush1.xpose.msra.mxu0 %v1988
        %2164 = vmatprep.subr.mxu0 0.0
        %2165 = vmatpush1.xpose.msra.mxu0 %v1991
        %2166 = vmatprep.subr.mxu0 0.0
        %2167 = vmatpush1.xpose.msra.mxu0 %v1994
        %2168 = vmatprep.subr.mxu0 0.0
        %2169 = vmatpush1.xpose.msra.mxu0 %v1997
        %2170 = vmatprep.subr.mxu0 0.0
        %2171 = vmatpush1.xpose.msra.mxu0 %v2000
        %2172 = vmatprep.subr.mxu0 0.0
        %2173 = vmatpush1.xpose.msra.mxu0 %v2003
        %2174 = vmatprep.subr.mxu0 0.0
        %2175 = vmatpush1.xpose.msra.mxu0 %v2006
        %2176 = vmatprep.subr.mxu0 0.0
        %2177 = vmatpush1.xpose.msra.mxu0 %v2009
        %2178 = vmatprep.subr.mxu0 0.0
        %2179 = vmatpush1.xpose.msra.mxu0 %v2012
        %2180 = vmatprep.subr.mxu0 0.0
        %2181 = vmatpush1.xpose.msra.mxu0 %v2015
        %2182 = vmatprep.subr.mxu0 0.0
        %2183 = vmatpush1.xpose.msra.mxu0 %v2018
        %2184 = vmatprep.subr.mxu0 0.0
        %2185 = vmatpush1.xpose.msra.mxu0 %v2021
        %2186 = vmatprep.subr.mxu0 0.0
        %2187 = vmatpush1.xpose.msra.mxu0 %v2024
        %2188 = vmatprep.subr.mxu0 0.0
        %2189 = vmatpush1.xpose.msra.mxu0 %v2027
        %2190 = vmatprep.subr.mxu0 0.0
        %2191 = vmatpush1.xpose.msra.mxu0 %v2030
        %2192 = vmatprep.mubr.f32.mxu0 0.0
        %2193 = vmatmul.mubr.f32.gmra.mrb[0].mxu0 %v1934
        %v2194 = vpop.f32.mrb[0].mxu0
        %v2195 = vadd.f32 %v1931, %v2194
        %v2196 = vpop.f32.mrb[0].mxu0
        %v2197 = vadd.f32 %v1931, %v2196
        %2198 = vdwg.mxu0
        %2199 = vmatprep.subr.mxu0 0.0
        %2200 = vmatpush1.xpose.msra.mxu0 %v2033
        %2201 = vmatprep.subr.mxu0 0.0
        %2202 = vmatpush1.xpose.msra.mxu0 %v2036
        %2203 = vmatprep.subr.mxu0 0.0
        %2204 = vmatpush1.xpose.msra.mxu0 %v2039
        %2205 = vmatprep.subr.mxu0 0.0
        %2206 = vmatpush1.xpose.msra.mxu0 %v2042
        %2207 = vmatprep.subr.mxu0 0.0
        %2208 = vmatpush1.xpose.msra.mxu0 %v2045
        %2209 = vmatprep.subr.mxu0 0.0
        %2210 = vmatpush1.xpose.msra.mxu0 %v2048
        %2211 = vmatprep.subr.mxu0 0.0
        %2212 = vmatpush1.xpose.msra.mxu0 %v2051
        %2213 = vmatprep.subr.mxu0 0.0
        %2214 = vmatpush1.xpose.msra.mxu0 %v2054
        %2215 = vmatprep.subr.mxu0 0.0
        %2216 = vmatpush1.xpose.msra.mxu0 %v2057
        %2217 = vmatprep.subr.mxu0 0.0
        %2218 = vmatpush1.xpose.msra.mxu0 %v2060
        %2219 = vmatprep.subr.mxu0 0.0
        %2220 = vmatpush1.xpose.msra.mxu0 %v2063
        %2221 = vmatprep.subr.mxu0 0.0
        %2222 = vmatpush1.xpose.msra.mxu0 %v2066
        %2223 = vmatprep.subr.mxu0 0.0
        %2224 = vmatpush1.xpose.msra.mxu0 %v2069
        %2225 = vmatprep.subr.mxu0 0.0
        %2226 = vmatpush1.xpose.msra.mxu0 %v2072
        %2227 = vmatprep.subr.mxu0 0.0
        %2228 = vmatpush1.xpose.msra.mxu0 %v2075
        %2229 = vmatprep.subr.mxu0 0.0
        %2230 = vmatpush1.xpose.msra.mxu0 %v2078
        %2231 = vmatprep.subr.mxu0 0.0
        %2232 = vmatpush1.xpose.msra.mxu0 %v2081
        %2233 = vmatprep.subr.mxu0 0.0
        %2234 = vmatpush1.xpose.msra.mxu0 %v2084
        %2235 = vmatprep.subr.mxu0 0.0
        %2236 = vmatpush1.xpose.msra.mxu0 %v2087
        %2237 = vmatprep.subr.mxu0 0.0
        %2238 = vmatpush1.xpose.msra.mxu0 %v2090
        %2239 = vmatprep.subr.mxu0 0.0
        %2240 = vmatpush1.xpose.msra.mxu0 %v2093
        %2241 = vmatprep.subr.mxu0 0.0
        %2242 = vmatpush1.xpose.msra.mxu0 %v2096
        %2243 = vmatprep.subr.mxu0 0.0
        %2244 = vmatpush1.xpose.msra.mxu0 %v2099
        %2245 = vmatprep.subr.mxu0 0.0
        %2246 = vmatpush1.xpose.msra.mxu0 %v2102
        %2247 = vmatprep.subr.mxu0 0.0
        %2248 = vmatpush1.xpose.msra.mxu0 %v2105
        %2249 = vmatprep.subr.mxu0 0.0
        %2250 = vmatpush1.xpose.msra.mxu0 %v2108
        %2251 = vmatprep.subr.mxu0 0.0
        %2252 = vmatpush1.xpose.msra.mxu0 %v2111
        %2253 = vmatprep.subr.mxu0 0.0
        %2254 = vmatpush1.xpose.msra.mxu0 %v2114
        %2255 = vmatprep.subr.mxu0 0.0
        %2256 = vmatpush1.xpose.msra.mxu0 %v2117
        %2257 = vmatprep.subr.mxu0 0.0
        %2258 = vmatpush1.xpose.msra.mxu0 %v2120
        %2259 = vmatprep.subr.mxu0 0.0
        %2260 = vmatpush1.xpose.msra.mxu0 %v2123
        %2261 = vmatprep.subr.mxu0 0.0
        %2262 = vmatpush1.xpose.msra.mxu0 %v2126
        %2263 = vmatprep.mubr.f32.mxu0 0.0
        %2264 = vmatmul.mubr.f32.gmra.mrb[0].mxu0 %v1934
        %v2265 = vpop.f32.mrb[0].mxu0
        %v2266 = vadd.f32 %v1931, %v2265
        %v2267 = vpop.f32.mrb[0].mxu0
        %v2268 = vadd.f32 %v1931, %v2267
        %2269 = vdwg.mxu0
        %v2270 = vsub.f32 0.0, %v2195
        %v2271 = vsub.f32 0.0, %v2197
        %v2272 = vsub.f32 0.0, %v2266
        %v2273 = vsub.f32 0.0, %v2268
        %v2274 = vmul.f32 %v2270, 1.442695
        %v2275 = vpow.pop %v2274
        %v2276 = vmul.f32 %v2271, 1.442695
        %v2277 = vpow.pop %v2276
        %v2278 = vmul.f32 %v2272, 1.442695
        %v2279 = vpow.pop %v2278
        %v2280 = vmul.f32 %v2273, 1.442695
        %v2281 = vpow.pop %v2280
        %v2282 = vadd.f32 %v2275, 1.0
        %v2283 = vadd.f32 %v2277, 1.0
        %v2284 = vadd.f32 %v2279, 1.0
        %v2285 = vadd.f32 %v2281, 1.0
        %v2286 = vrcp.pop %v2282
        %v2287 = vrcp.pop %v2283
        %v2288 = vrcp.pop %v2284
        %v2289 = vrcp.pop %v2285
        %v2294 = vcombine.low %v2286, %v2287
        %v2295 = vcombine.low %v2288, %v2289
        %v2297 = vunpack.c.l.s4 1966171168
        %v2298 = vunpack.c.0.s8 %v2297
        %v2299 = vlaneseq
        %v2300 = vshrl.u32 %v2299, 7
        %v2301 = vsub.s32 %v2298, %v2300
        %v2302 = vrot.slane %v2294, %v2301
        %v2304 = vunpack.c.l.s4 1966171168
        %v2305 = vunpack.c.0.s8 %v2304
        %v2306 = vlaneseq
        %v2307 = vshrl.u32 %v2306, 7
        %v2308 = vsub.s32 %v2305, %v2307
        %v2309 = vrot.slane %v2295, %v2308
        %v2310 = vcombine.low %v2302, %v2309
        %v2312 = vunpack.c.l.s4 1966171168
        %v2313 = vunpack.c.0.s8 %v2312
        %v2314 = vlaneseq
        %v2315 = vshrl.u32 %v2314, 7
        %v2316 = vsub.s32 %v2313, %v2315
        %v2317 = vrot.slane %v2310, %v2316
        %v2319 = vlaneseq
        %vm2320 = vcmp.ge.s32.totalorder %v2319, 0
        %vm2321 = vcmp.lt.s32.totalorder %v2319, 512
        %vm2322 = vmand %vm2320, %vm2321
        %2323 = vst.msk [vmem:[%s245] sm:$0xf] %vm2322, %v2317
        %s2324 = sand.u32 %s142, 1
        %s2325 = scalar_lea.sflag [#allocation5], %s2324
        %s2326 = sand.u32 %s142, 1
        %s2327 = smul.addr %s2326, 4
        %s2328 = scalar_lea.vmem [#allocation6], %s2327
        // Predicated region
        $region45: #{tpu_custom_call.1} parent=39 // pred_check
          %p2329 = pneg %p152
        $region46: #{tpu_custom_call.1} parent=39 // pred_check_branch
          %2331 = sbr.rel (%p2329) target = $region48
        $region47: #{tpu_custom_call.1} parent=39 // pred_region
          %s2333 = ssub.s32 64, 64
          %2334 = vsyncadd %s2325, %s2333
          %s2335 = smul.addr %s24, 4
          %s2336 = smul.addr %s2335, 16
          %s2337 = scalar_lea.hbm %s5, %s2336
          %s2339 = sshll.u32 %s2328, 4
          %s2340 = int_to_ptr.vmem [resolvable:$true] %s2339
          %2342 = dma.vmem_to_hbm [thread:$0]  %s2340, 64, %s2337, %s2325
        $region48: #{tpu_custom_call.1} parent=39 // pred_fallthru
          _
      $region40: #{tpu_custom_call.1} parent=5 // pred_fallthru
        _
      %p2343 = scmp.le.s32.totalorder 2, %s19
      // Predicated region
      $region49: #{tpu_custom_call.1} parent=5 // pred_check
        %p2344 = pneg %p2343
      $region50: #{tpu_custom_call.1} parent=5 // pred_check_branch
        %2346 = sbr.rel (%p2344) target = $region52
      $region51: #{tpu_custom_call.1} parent=5 // pred_region
        %s2347 = ssub.s32 %s19, 2
        // Predicated region
        $region53: #{tpu_custom_call.1} parent=51 // pred_check
          %p2348 = pneg %p158
        $region54: #{tpu_custom_call.1} parent=51 // pred_check_branch
          %2350 = sbr.rel (%p2348) target = $region56
        $region55: #{tpu_custom_call.1} parent=51 // pred_region
          %s2351 = sand.u32 %s143, 1
          %s2352 = scalar_lea.sflag [#allocation5], %s2351
          %s2353 = sand.u32 %s143, 1
          %s2354 = smul.addr %s2353, 4
          %s2355 = scalar_lea.vmem [#allocation6], %s2354
          %2356 = dma.done %s2352, 64
        $region56: #{tpu_custom_call.1} parent=51 // pred_fallthru
          _
      $region52: #{tpu_custom_call.1} parent=5 // pred_fallthru
        _
    $region6: #{tpu_custom_call.1} parent=1 // loop_footer
      %s23 = sadd.s32 1, %s19
    $region7: #{tpu_custom_call.1} parent=1 // loop_footer_branch
      %18 = sbr.rel target = $region3
    $region8: #{tpu_custom_call.1} parent=1 // loop_exit
      _
    %2357 = vsyncpa [#allocation4], 1
    %s2358 = scalar_lea.sflag [#allocation4], 1
    %2359 = vsyncpa %s2358, 1
    %2360 = vsyncpa [#allocation5], 1
    %s2361 = scalar_lea.sflag [#allocation5], 1
    %2362 = vsyncpa %s2361, 1

</llo_original>
